<compile_context>
chip_gen: v7x
topology: tpu7x:2x2x1
jax: 0.10.0
libtpu: 0.0.40
codegen_flags: <defaults>
</compile_context>

<pallas_src>
import functools
import math

import jax
import jax.numpy as jnp
from jax import lax
from jax.experimental import pallas as pl
from jax.experimental.pallas import tpu as pltpu


def _layernorm(x, gamma, beta, eps=1e-5):
    """LayerNorm over the last axis in f32. gamma/beta are (1, D) rows."""
    mean = jnp.mean(x, axis=-1, keepdims=True)
    var = jnp.mean((x - mean) ** 2, axis=-1, keepdims=True)
    return (x - mean) * lax.rsqrt(var + eps) * gamma + beta


def _exclusive_row_prefix_sum(s, use_matmul):
    """F[n, :] = sum_{k < n} s[k, :]  (== roll(+1, rows); row0=0; cumsum(rows))."""
    n = s.shape[0]
    row = lax.broadcasted_iota(jnp.int32, s.shape, 0)
    if use_matmul:
        # Tiny N: one small MXU matmul with a strictly-lower-triangular mask.
        col = lax.broadcasted_iota(jnp.int32, s.shape, 1)
        strict_lower = (col < row).astype(jnp.float32)
        return jnp.dot(strict_lower, s, preferred_element_type=jnp.float32)
    # Large N: Hillis-Steele scan over rows (XLU rolls + VPU adds),
    # O(N^2 log N) instead of the O(N^3) matmul.
    acc = jnp.where(row >= 1, pltpu.roll(s, 1, axis=0), 0.0)
    shift = 1
    while shift < n:
        acc = acc + jnp.where(row >= shift, pltpu.roll(acc, shift, axis=0), 0.0)
        shift *= 2
    return acc


def _msa_kernel(x_ref, wq_ref, wk_ref, wv_ref, wo_ref,
                gq_ref, bq_ref, gk_ref, bk_ref,
                out_ref, fmask_ref, *, num_heads, d_head, block_b, seq_len):
    bb, n = block_b, seq_len
    d = num_heads * d_head

    # One (bb, N, D) slab -> (bb*N, D): the projections/LayerNorms run batched
    # over the whole slab (better MXU shapes for small N/D).
    x = x_ref[...].reshape(bb * n, d).astype(jnp.bfloat16)

    # Projections: bf16 operands, f32 accumulation; LayerNorm in f32.
    q = _layernorm(jnp.dot(x, wq_ref[...], preferred_element_type=jnp.float32),
                   gq_ref[...], bq_ref[...])
    k = _layernorm(jnp.dot(x, wk_ref[...], preferred_element_type=jnp.float32),
                   gk_ref[...], bk_ref[...])
    v = jnp.dot(x, wv_ref[...], preferred_element_type=jnp.float32)

    # Fold the 1/sqrt(d_head) softmax scale into q once, then go bf16 for the
    # attention matmuls.
    q = (q * jnp.float32(1.0 / math.sqrt(d_head))).astype(jnp.bfloat16)
    k = k.astype(jnp.bfloat16)
    v = v.astype(jnp.bfloat16)

    row = lax.broadcasted_iota(jnp.int32, (n, n), 0)
    col = lax.broadcasted_iota(jnp.int32, (n, n), 1)
    causal = col <= row
    neg_inf = jnp.float32(-jnp.inf)
    use_matmul_scan = n <= 256  # MXU is idle at tiny N; switch to scan when big.

    for b in range(bb):                              # bb is small & static
        qb = q[b * n:(b + 1) * n]
        kb = k[b * n:(b + 1) * n]
        vb = v[b * n:(b + 1) * n]

        # ---- head 0 only: selective mask S -> F_mask ------------------------
        lg0 = jnp.einsum("nd,md->nm", qb[:, :d_head], kb[:, :d_head],
                         preferred_element_type=jnp.float32)
        lg0 = jnp.where(causal, lg0, neg_inf)
        s = jnp.maximum(lg0, 0.0)                    # relu (relu(-inf) -> 0)
        s = jnp.where((col == 0) | (col == row), 0.0, s)   # S[...,0]=0, (1-eye)*S
        f_mask = _exclusive_row_prefix_sum(s, use_matmul_scan)

        # ---- streamed per-head attention (one (N,N) tile live at a time) ----
        out = jnp.zeros((n, d), jnp.float32)
        for h in range(num_heads):
            sl = slice(h * d_head, (h + 1) * d_head)
            lg = jnp.einsum("nd,md->nm", qb[:, sl], kb[:, sl],
                            preferred_element_type=jnp.float32)
            lg = jnp.where(causal, lg, neg_inf) - f_mask
            m = jnp.max(lg, axis=-1, keepdims=True)
            p = jnp.exp(lg - m)
            p = p * pl.reciprocal(jnp.sum(p, axis=-1, keepdims=True), approx=True)
            oh = jnp.dot(p.astype(jnp.bfloat16), vb[:, sl],
                         preferred_element_type=jnp.float32)
            # W_o is head-major (H, d_head, D): leading-axis ref index, no
            # packed-sublane slicing of a (D, D) bf16 weight.
            out = out + jnp.dot(oh.astype(jnp.bfloat16), wo_ref[h],
                                preferred_element_type=jnp.float32)

        out_ref[b] = out.astype(out_ref.dtype)
        fmask_ref[b] = f_mask.astype(fmask_ref.dtype)
        # TODO(synk): for realistic N (>=1024) add a query-tile grid axis with
        # online softmax and a carried column-prefix of S, so only a (tq, N)
        # logits tile is ever live.


def multihead_selective_attention(x, params, num_heads, block_b=None):
    B, N, D = x.shape
    assert D % num_heads == 0, "d_model must be divisible by num_heads"
    d_head = D // num_heads

    if block_b is None:
        # Pack several batch elements per grid step when N is small (amortizes
        # per-step overhead, MXU-shaped projections); 1 for long sequences.
        cap = max(1, 512 // max(N, 1))
        block_b = 1
        for c in range(1, B + 1):
            if B % c == 0 and c <= cap:
                block_b = c
    bb = block_b
    assert B % bb == 0

    # bf16 matmul operands (halves weight VMEM/HBM traffic); accumulation in
    # the kernel stays f32.  W_o is reshaped head-major on the host.
    wq = params["wq_t"].astype(jnp.bfloat16)
    wk = params["wk_t"].astype(jnp.bfloat16)
    wv = params["wv_t"].astype(jnp.bfloat16)
    wo = params["wo_t"].reshape(num_heads, d_head, D).astype(jnp.bfloat16)

    kernel = functools.partial(_msa_kernel, num_heads=num_heads, d_head=d_head,
                               block_b=bb, seq_len=N)

    def full(shape):
        return pl.BlockSpec(shape, lambda b: (0,) * len(shape))

    # Working-set estimate -> explicit vmem limit (double-buffered operands +
    # in-kernel live values), with headroom; never below the 32 MiB default.
    est = 2 * (bb * N * D * 4            # X slab (f32), double-buffered
               + 4 * D * D * 2           # Wq/Wk/Wv/Wo in bf16
               + 4 * D * 4               # LayerNorm gamma/beta
               + bb * N * D * 4 + bb * N * N * 4)   # outputs
    est += 3 * bb * N * D * 4 + 4 * N * N * 4 + bb * N * D * 4  # q/k/v, tiles, acc
    vmem_limit = int(min(max(2 * est, 32 * 1024 * 1024), 128 * 1024 * 1024))

    return pl.pallas_call(
        kernel,
        grid=(B // bb,),
        in_specs=[
            pl.BlockSpec((bb, N, D), lambda b: (b, 0, 0)),   # X
            full((D, D)), full((D, D)), full((D, D)),        # Wq, Wk, Wv (pre-T)
            full((num_heads, d_head, D)),                    # Wo (head-major)
            full((1, D)), full((1, D)),                      # norm_q gamma/beta
            full((1, D)), full((1, D)),                      # norm_k gamma/beta
        ],
        out_specs=(
            pl.BlockSpec((bb, N, D), lambda b: (b, 0, 0)),   # output
            pl.BlockSpec((bb, N, N), lambda b: (b, 0, 0)),   # F_mask
        ),
        out_shape=(
            jax.ShapeDtypeStruct((B, N, D), jnp.float32),
            jax.ShapeDtypeStruct((B, N, N), jnp.float32),
        ),
        compiler_params=pltpu.CompilerParams(
            dimension_semantics=("parallel",),   # batch slabs independent -> v7x 2 TCs
            vmem_limit_bytes=vmem_limit),
    )(x, wq, wk, wv, wo, params["gq"], params["bq"], params["gk"], params["bk"])


def reference(x, params, num_heads):
    """Pure-JAX replica of the PyTorch forward, mirroring the kernel's mixed
    precision (bf16 matmul operands, f32 accumulation / LayerNorm / softmax)."""
    B, N, D = x.shape
    dh = D // num_heads
    bf, f32 = jnp.bfloat16, jnp.float32

    def ln(y, g, b):
        m = y.mean(-1, keepdims=True)
        v = ((y - m) ** 2).mean(-1, keepdims=True)
        return (y - m) * lax.rsqrt(v + 1e-5) * g + b

    xb = x.astype(bf)
    q = ln(jnp.dot(xb, params["wq_t"].astype(bf), preferred_element_type=f32),
           params["gq"][0], params["bq"][0])
    k = ln(jnp.dot(xb, params["wk_t"].astype(bf), preferred_element_type=f32),
           params["gk"][0], params["bk"][0])
    v = jnp.dot(xb, params["wv_t"].astype(bf), preferred_element_type=f32)

    q = (q * jnp.float32(1.0 / math.sqrt(dh))).astype(bf)   # scale folded into q
    q = q.reshape(B, N, num_heads, dh).transpose(0, 2, 1, 3)
    k = k.astype(bf).reshape(B, N, num_heads, dh).transpose(0, 2, 1, 3)
    v = v.astype(bf).reshape(B, N, num_heads, dh).transpose(0, 2, 1, 3)

    logits = jnp.einsum("bhnd,bhmd->bhnm", q, k, preferred_element_type=f32)
    row = jnp.arange(N)[:, None]
    col = jnp.arange(N)[None, :]
    logits = jnp.where(col <= row, logits, -jnp.inf)

    s = jnp.maximum(logits[:, 0], 0.0)
    s = s.at[..., 0].set(0.0)
    s = s * (1.0 - jnp.eye(N))
    s = jnp.roll(s, 1, axis=-2)
    s = s.at[..., 0, :].set(0.0)
    f_mask = jnp.cumsum(s, axis=-2)

    logits = logits - f_mask[:, None]
    w = jax.nn.softmax(logits, axis=-1)
    o = jnp.einsum("bhnm,bhmd->bhnd", w.astype(bf), v, preferred_element_type=f32)
    o = o.transpose(0, 2, 1, 3).reshape(B, N, D)
    out = jnp.dot(o.astype(bf), params["wo_t"].astype(bf),
                  preferred_element_type=f32)
    return out, f_mask


def init_params(key, d_model):
    ks = jax.random.split(key, 4)
    scale = 1.0 / math.sqrt(d_model)
    return {
        # nn.Linear weight is (out,in) applied as x @ W.T; we store W.T directly.
        "wq_t": jax.random.normal(ks[0], (d_model, d_model), jnp.float32) * scale,
        "wk_t": jax.random.normal(ks[1], (d_model, d_model), jnp.float32) * scale,
        "wv_t": jax.random.normal(ks[2], (d_model, d_model), jnp.float32) * scale,
        "wo_t": jax.random.normal(ks[3], (d_model, d_model), jnp.float32) * scale,
        # LayerNorm default init: weight=1, bias=0 (stored as (1, d_model) rows).
        "gq": jnp.ones((1, d_model), jnp.float32),
        "bq": jnp.zeros((1, d_model), jnp.float32),
        "gk": jnp.ones((1, d_model), jnp.float32),
        "bk": jnp.zeros((1, d_model), jnp.float32),
    }


if __name__ == "__main__":
    batch, N, d_model, num_heads = 2, 8, 32, 4
    key = jax.random.PRNGKey(0)
    k_x, k_p = jax.random.split(key)
    x = jax.random.normal(k_x, (batch, N, d_model), jnp.float32)
    params = init_params(k_p, d_model)

    out, f_mask = multihead_selective_attention(x, params, num_heads)
    out, f_mask = jax.block_until_ready((out, f_mask))

    ref_out, ref_f = reference(x, params, num_heads)
    # Tolerance covers bf16-operand matmuls + approx softmax reciprocal.
    assert jnp.allclose(out, ref_out, atol=2e-2, rtol=2e-2), "output mismatch"
    assert jnp.allclose(f_mask, ref_f, atol=2e-2, rtol=2e-2), "F_mask mismatch"

    print("KERNEL_OK")
</pallas_src>

<mosaic_0001>
module attributes {stable_mosaic.version = 11 : i64} {
  func.func @_msa_kernel(%arg0: i32, %arg1: memref<2x8x32xf32, #tpu.memory_space<vmem>>, %arg2: memref<32x32xbf16, #tpu.memory_space<vmem>>, %arg3: memref<32x32xbf16, #tpu.memory_space<vmem>>, %arg4: memref<32x32xbf16, #tpu.memory_space<vmem>>, %arg5: memref<4x8x32xbf16, #tpu.memory_space<vmem>>, %arg6: memref<1x32xf32, #tpu.memory_space<vmem>>, %arg7: memref<1x32xf32, #tpu.memory_space<vmem>>, %arg8: memref<1x32xf32, #tpu.memory_space<vmem>>, %arg9: memref<1x32xf32, #tpu.memory_space<vmem>>, %arg10: memref<2x8x32xf32, #tpu.memory_space<vmem>>, %arg11: memref<2x8x8xf32, #tpu.memory_space<vmem>>) attributes {dimension_semantics = [#tpu.dimension_semantics<parallel>], iteration_bounds = array<i64: 1>, scalar_prefetch = 0 : i64, scratch_operands = 0 : i64, tpu.core_type = #tpu.core_type<tc>, window_params = [{transform_indices = @transform_0, window_bounds = array<i64: 2, 8, 32>}, {pipeline_mode = #tpu.pipeline_mode<synchronous>, transform_indices = @transform_1, window_bounds = array<i64: 32, 32>}, {pipeline_mode = #tpu.pipeline_mode<synchronous>, transform_indices = @transform_2, window_bounds = array<i64: 32, 32>}, {pipeline_mode = #tpu.pipeline_mode<synchronous>, transform_indices = @transform_3, window_bounds = array<i64: 32, 32>}, {pipeline_mode = #tpu.pipeline_mode<synchronous>, transform_indices = @transform_4, window_bounds = array<i64: 4, 8, 32>}, {pipeline_mode = #tpu.pipeline_mode<synchronous>, transform_indices = @transform_5, window_bounds = array<i64: 1, 32>}, {pipeline_mode = #tpu.pipeline_mode<synchronous>, transform_indices = @transform_6, window_bounds = array<i64: 1, 32>}, {pipeline_mode = #tpu.pipeline_mode<synchronous>, transform_indices = @transform_7, window_bounds = array<i64: 1, 32>}, {pipeline_mode = #tpu.pipeline_mode<synchronous>, transform_indices = @transform_8, window_bounds = array<i64: 1, 32>}, {transform_indices = @transform_9, window_bounds = array<i64: 2, 8, 32>}, {transform_indices = @transform_10, window_bounds = array<i64: 2, 8, 8>}]} {
    %c0 = arith.constant 0 : index
    %c0_0 = arith.constant 0 : index
    %c0_1 = arith.constant 0 : index
    %0 = vector.load %arg1[%c0, %c0_0, %c0_1] : memref<2x8x32xf32, #tpu.memory_space<vmem>>, vector<2x8x32xf32>
    %1 = vector.shape_cast %0 : vector<2x8x32xf32> to vector<16x32xf32>
    %2 = arith.truncf %1 : vector<16x32xf32> to vector<16x32xbf16>
    %c0_2 = arith.constant 0 : index
    %c0_3 = arith.constant 0 : index
    %3 = vector.load %arg2[%c0_2, %c0_3] : memref<32x32xbf16, #tpu.memory_space<vmem>>, vector<32x32xbf16>
    %cst = arith.constant dense<0.000000e+00> : vector<16x32xf32>
    %4 = tpu.matmul %2, %3, %cst {dimension_numbers = #tpu.dot_dimension_numbers<[1], [0], [0], [1], [0, 0, 1, 1], [], []>} : vector<16x32xbf16>, vector<32x32xbf16>, vector<16x32xf32> -> vector<16x32xf32>
    %c0_4 = arith.constant 0 : index
    %c0_5 = arith.constant 0 : index
    %5 = vector.load %arg6[%c0_4, %c0_5] : memref<1x32xf32, #tpu.memory_space<vmem>>, vector<1x32xf32>
    %c0_6 = arith.constant 0 : index
    %c0_7 = arith.constant 0 : index
    %6 = vector.load %arg7[%c0_6, %c0_7] : memref<1x32xf32, #tpu.memory_space<vmem>>, vector<1x32xf32>
    %cst_8 = arith.constant dense<0.000000e+00> : vector<16xf32>
    %7 = vector.multi_reduction <add>, %4, %cst_8 [1] : vector<16x32xf32> to vector<16xf32>
    %8 = vector.shape_cast %7 : vector<16xf32> to vector<16x1xf32>
    %cst_9 = arith.constant 3.200000e+01 : f32
    %9 = vector.broadcast %cst_9 : f32 to vector<16x1xf32>
    %10 = arith.divf %8, %9 : vector<16x1xf32>
    %11 = vector.broadcast %10 : vector<16x1xf32> to vector<16x32xf32>
    %12 = arith.subf %4, %11 : vector<16x32xf32>
    %13 = arith.mulf %12, %12 : vector<16x32xf32>
    %cst_10 = arith.constant dense<0.000000e+00> : vector<16xf32>
    %14 = vector.multi_reduction <add>, %13, %cst_10 [1] : vector<16x32xf32> to vector<16xf32>
    %15 = vector.shape_cast %14 : vector<16xf32> to vector<16x1xf32>
    %cst_11 = arith.constant 3.200000e+01 : f32
    %16 = vector.broadcast %cst_11 : f32 to vector<16x1xf32>
    %17 = arith.divf %15, %16 : vector<16x1xf32>
    %18 = vector.broadcast %10 : vector<16x1xf32> to vector<16x32xf32>
    %19 = arith.subf %4, %18 : vector<16x32xf32>
    %cst_12 = arith.constant 9.99999974E-6 : f32
    %20 = vector.broadcast %cst_12 : f32 to vector<16x1xf32>
    %21 = arith.addf %17, %20 : vector<16x1xf32>
    %22 = math.rsqrt %21 : vector<16x1xf32>
    %23 = vector.broadcast %22 : vector<16x1xf32> to vector<16x32xf32>
    %24 = arith.mulf %19, %23 : vector<16x32xf32>
    %25 = vector.broadcast %5 : vector<1x32xf32> to vector<16x32xf32>
    %26 = arith.mulf %24, %25 : vector<16x32xf32>
    %27 = vector.broadcast %6 : vector<1x32xf32> to vector<16x32xf32>
    %28 = arith.addf %26, %27 : vector<16x32xf32>
    %c0_13 = arith.constant 0 : index
    %c0_14 = arith.constant 0 : index
    %29 = vector.load %arg3[%c0_13, %c0_14] : memref<32x32xbf16, #tpu.memory_space<vmem>>, vector<32x32xbf16>
    %cst_15 = arith.constant dense<0.000000e+00> : vector<16x32xf32>
    %30 = tpu.matmul %2, %29, %cst_15 {dimension_numbers = #tpu.dot_dimension_numbers<[1], [0], [0], [1], [0, 0, 1, 1], [], []>} : vector<16x32xbf16>, vector<32x32xbf16>, vector<16x32xf32> -> vector<16x32xf32>
    %c0_16 = arith.constant 0 : index
    %c0_17 = arith.constant 0 : index
    %31 = vector.load %arg8[%c0_16, %c0_17] : memref<1x32xf32, #tpu.memory_space<vmem>>, vector<1x32xf32>
    %c0_18 = arith.constant 0 : index
    %c0_19 = arith.constant 0 : index
    %32 = vector.load %arg9[%c0_18, %c0_19] : memref<1x32xf32, #tpu.memory_space<vmem>>, vector<1x32xf32>
    %cst_20 = arith.constant dense<0.000000e+00> : vector<16xf32>
    %33 = vector.multi_reduction <add>, %30, %cst_20 [1] : vector<16x32xf32> to vector<16xf32>
    %34 = vector.shape_cast %33 : vector<16xf32> to vector<16x1xf32>
    %cst_21 = arith.constant 3.200000e+01 : f32
    %35 = vector.broadcast %cst_21 : f32 to vector<16x1xf32>
    %36 = arith.divf %34, %35 : vector<16x1xf32>
    %37 = vector.broadcast %36 : vector<16x1xf32> to vector<16x32xf32>
    %38 = arith.subf %30, %37 : vector<16x32xf32>
    %39 = arith.mulf %38, %38 : vector<16x32xf32>
    %cst_22 = arith.constant dense<0.000000e+00> : vector<16xf32>
    %40 = vector.multi_reduction <add>, %39, %cst_22 [1] : vector<16x32xf32> to vector<16xf32>
    %41 = vector.shape_cast %40 : vector<16xf32> to vector<16x1xf32>
    %cst_23 = arith.constant 3.200000e+01 : f32
    %42 = vector.broadcast %cst_23 : f32 to vector<16x1xf32>
    %43 = arith.divf %41, %42 : vector<16x1xf32>
    %44 = vector.broadcast %36 : vector<16x1xf32> to vector<16x32xf32>
    %45 = arith.subf %30, %44 : vector<16x32xf32>
    %cst_24 = arith.constant 9.99999974E-6 : f32
    %46 = vector.broadcast %cst_24 : f32 to vector<16x1xf32>
    %47 = arith.addf %43, %46 : vector<16x1xf32>
    %48 = math.rsqrt %47 : vector<16x1xf32>
    %49 = vector.broadcast %48 : vector<16x1xf32> to vector<16x32xf32>
    %50 = arith.mulf %45, %49 : vector<16x32xf32>
    %51 = vector.broadcast %31 : vector<1x32xf32> to vector<16x32xf32>
    %52 = arith.mulf %50, %51 : vector<16x32xf32>
    %53 = vector.broadcast %32 : vector<1x32xf32> to vector<16x32xf32>
    %54 = arith.addf %52, %53 : vector<16x32xf32>
    %c0_25 = arith.constant 0 : index
    %c0_26 = arith.constant 0 : index
    %55 = vector.load %arg4[%c0_25, %c0_26] : memref<32x32xbf16, #tpu.memory_space<vmem>>, vector<32x32xbf16>
    %cst_27 = arith.constant dense<0.000000e+00> : vector<16x32xf32>
    %56 = tpu.matmul %2, %55, %cst_27 {dimension_numbers = #tpu.dot_dimension_numbers<[1], [0], [0], [1], [0, 0, 1, 1], [], []>} : vector<16x32xbf16>, vector<32x32xbf16>, vector<16x32xf32> -> vector<16x32xf32>
    %cst_28 = arith.constant 0.353553385 : f32
    %57 = vector.broadcast %cst_28 : f32 to vector<16x32xf32>
    %58 = arith.mulf %28, %57 : vector<16x32xf32>
    %59 = arith.truncf %58 : vector<16x32xf32> to vector<16x32xbf16>
    %60 = arith.truncf %54 : vector<16x32xf32> to vector<16x32xbf16>
    %61 = arith.truncf %56 : vector<16x32xf32> to vector<16x32xbf16>
    %62 = tpu.iota {dimensions = array<i32: 0>} : vector<8x8xi32>
    %63 = tpu.iota {dimensions = array<i32: 1>} : vector<8x8xi32>
    %64 = arith.cmpi sle, %63, %62 : vector<8x8xi32>
    %65 = vector.extract_strided_slice %59 {offsets = [0, 0], sizes = [8, 32], strides = [1, 1]} : vector<16x32xbf16> to vector<8x32xbf16>
    %66 = vector.extract_strided_slice %60 {offsets = [0, 0], sizes = [8, 32], strides = [1, 1]} : vector<16x32xbf16> to vector<8x32xbf16>
    %67 = vector.extract_strided_slice %61 {offsets = [0, 0], sizes = [8, 32], strides = [1, 1]} : vector<16x32xbf16> to vector<8x32xbf16>
    %68 = vector.extract_strided_slice %65 {offsets = [0, 0], sizes = [8, 8], strides = [1, 1]} : vector<8x32xbf16> to vector<8x8xbf16>
    %69 = vector.extract_strided_slice %66 {offsets = [0, 0], sizes = [8, 8], strides = [1, 1]} : vector<8x32xbf16> to vector<8x8xbf16>
    "tpu.trace_start"() <{level = 10 : i32, message = "nd,md->nm"}> : () -> ()
    %cst_29 = arith.constant dense<0.000000e+00> : vector<8x8xf32>
    %70 = tpu.matmul %68, %69, %cst_29 {dimension_numbers = #tpu.dot_dimension_numbers<[1], [1], [0], [0], [0, 0, 1, 0], [], []>} : vector<8x8xbf16>, vector<8x8xbf16>, vector<8x8xf32> -> vector<8x8xf32>
    %cst_30 = arith.constant 0xFF800000 : f32
    "tpu.trace_stop"() : () -> ()
    %71 = vector.broadcast %cst_30 : f32 to vector<8x8xf32>
    %72 = arith.select %64, %70, %71 : vector<8x8xi1>, vector<8x8xf32>
    %cst_31 = arith.constant 0.000000e+00 : f32
    %73 = vector.broadcast %cst_31 : f32 to vector<8x8xf32>
    %74 = arith.maximumf %72, %73 : vector<8x8xf32>
    %c0_i32 = arith.constant 0 : i32
    %75 = vector.broadcast %c0_i32 : i32 to vector<8x8xi32>
    %76 = arith.cmpi eq, %63, %75 : vector<8x8xi32>
    %77 = arith.cmpi eq, %63, %62 : vector<8x8xi32>
    %78 = arith.ori %76, %77 : vector<8x8xi1>
    %cst_32 = arith.constant 0.000000e+00 : f32
    %79 = vector.broadcast %cst_32 : f32 to vector<8x8xf32>
    %80 = arith.select %78, %79, %74 : vector<8x8xi1>, vector<8x8xf32>
    %81 = tpu.iota {dimensions = array<i32: 0>} : vector<8x8xi32>
    %82 = tpu.iota {dimensions = array<i32: 1>} : vector<8x8xi32>
    %83 = arith.cmpi slt, %82, %81 : vector<8x8xi32>
    %84 = arith.extui %83 : vector<8x8xi1> to vector<8x8xi32>
    %85 = arith.sitofp %84 : vector<8x8xi32> to vector<8x8xf32>
    %cst_33 = arith.constant dense<0.000000e+00> : vector<8x8xf32>
    %86 = tpu.matmul %85, %80, %cst_33 {dimension_numbers = #tpu.dot_dimension_numbers<[1], [0], [0], [1], [0, 0, 1, 1], [], []>} : vector<8x8xf32>, vector<8x8xf32>, vector<8x8xf32> -> vector<8x8xf32>
    %cst_34 = arith.constant 0.000000e+00 : f32
    %87 = vector.broadcast %cst_34 : f32 to vector<8x32xf32>
    %88 = vector.extract_strided_slice %65 {offsets = [0, 0], sizes = [8, 8], strides = [1, 1]} : vector<8x32xbf16> to vector<8x8xbf16>
    %89 = vector.extract_strided_slice %66 {offsets = [0, 0], sizes = [8, 8], strides = [1, 1]} : vector<8x32xbf16> to vector<8x8xbf16>
    "tpu.trace_start"() <{level = 10 : i32, message = "nd,md->nm"}> : () -> ()
    %cst_35 = arith.constant dense<0.000000e+00> : vector<8x8xf32>
    %90 = tpu.matmul %88, %89, %cst_35 {dimension_numbers = #tpu.dot_dimension_numbers<[1], [1], [0], [0], [0, 0, 1, 0], [], []>} : vector<8x8xbf16>, vector<8x8xbf16>, vector<8x8xf32> -> vector<8x8xf32>
    %cst_36 = arith.constant 0xFF800000 : f32
    "tpu.trace_stop"() : () -> ()
    %91 = vector.broadcast %cst_36 : f32 to vector<8x8xf32>
    %92 = arith.select %64, %90, %91 : vector<8x8xi1>, vector<8x8xf32>
    %93 = arith.subf %92, %86 : vector<8x8xf32>
    %cst_37 = arith.constant dense<0xFF800000> : vector<8xf32>
    %94 = vector.multi_reduction <maximumf>, %93, %cst_37 [1] : vector<8x8xf32> to vector<8xf32>
    %95 = vector.shape_cast %94 : vector<8xf32> to vector<8x1xf32>
    %96 = vector.broadcast %95 : vector<8x1xf32> to vector<8x8xf32>
    %97 = arith.subf %93, %96 : vector<8x8xf32>
    %98 = math.exp %97 : vector<8x8xf32>
    %cst_38 = arith.constant dense<0.000000e+00> : vector<8xf32>
    %99 = vector.multi_reduction <add>, %98, %cst_38 [1] : vector<8x8xf32> to vector<8xf32>
    %100 = vector.shape_cast %99 : vector<8xf32> to vector<8x1xf32>
    %101 = tpu.reciprocal %100 {approx = true} : vector<8x1xf32> -> vector<8x1xf32>
    %102 = vector.broadcast %101 : vector<8x1xf32> to vector<8x8xf32>
    %103 = arith.mulf %98, %102 : vector<8x8xf32>
    %104 = arith.truncf %103 : vector<8x8xf32> to vector<8x8xbf16>
    %105 = vector.extract_strided_slice %67 {offsets = [0, 0], sizes = [8, 8], strides = [1, 1]} : vector<8x32xbf16> to vector<8x8xbf16>
    %cst_39 = arith.constant dense<0.000000e+00> : vector<8x8xf32>
    %106 = tpu.matmul %104, %105, %cst_39 {dimension_numbers = #tpu.dot_dimension_numbers<[1], [0], [0], [1], [0, 0, 1, 1], [], []>} : vector<8x8xbf16>, vector<8x8xbf16>, vector<8x8xf32> -> vector<8x8xf32>
    %107 = arith.truncf %106 : vector<8x8xf32> to vector<8x8xbf16>
    %c0_40 = arith.constant 0 : index
    %c0_41 = arith.constant 0 : index
    %c0_42 = arith.constant 0 : index
    %108 = vector.load %arg5[%c0_40, %c0_41, %c0_42] : memref<4x8x32xbf16, #tpu.memory_space<vmem>>, vector<1x8x32xbf16>
    %109 = vector.shape_cast %108 : vector<1x8x32xbf16> to vector<8x32xbf16>
    %cst_43 = arith.constant dense<0.000000e+00> : vector<8x32xf32>
    %110 = tpu.matmul %107, %109, %cst_43 {dimension_numbers = #tpu.dot_dimension_numbers<[1], [0], [0], [1], [0, 0, 1, 1], [], []>} : vector<8x8xbf16>, vector<8x32xbf16>, vector<8x32xf32> -> vector<8x32xf32>
    %111 = arith.addf %87, %110 : vector<8x32xf32>
    %112 = vector.extract_strided_slice %65 {offsets = [0, 8], sizes = [8, 8], strides = [1, 1]} : vector<8x32xbf16> to vector<8x8xbf16>
    %113 = vector.extract_strided_slice %66 {offsets = [0, 8], sizes = [8, 8], strides = [1, 1]} : vector<8x32xbf16> to vector<8x8xbf16>
    "tpu.trace_start"() <{level = 10 : i32, message = "nd,md->nm"}> : () -> ()
    %cst_44 = arith.constant dense<0.000000e+00> : vector<8x8xf32>
    %114 = tpu.matmul %112, %113, %cst_44 {dimension_numbers = #tpu.dot_dimension_numbers<[1], [1], [0], [0], [0, 0, 1, 0], [], []>} : vector<8x8xbf16>, vector<8x8xbf16>, vector<8x8xf32> -> vector<8x8xf32>
    %cst_45 = arith.constant 0xFF800000 : f32
    "tpu.trace_stop"() : () -> ()
    %115 = vector.broadcast %cst_45 : f32 to vector<8x8xf32>
    %116 = arith.select %64, %114, %115 : vector<8x8xi1>, vector<8x8xf32>
    %117 = arith.subf %116, %86 : vector<8x8xf32>
    %cst_46 = arith.constant dense<0xFF800000> : vector<8xf32>
    %118 = vector.multi_reduction <maximumf>, %117, %cst_46 [1] : vector<8x8xf32> to vector<8xf32>
    %119 = vector.shape_cast %118 : vector<8xf32> to vector<8x1xf32>
    %120 = vector.broadcast %119 : vector<8x1xf32> to vector<8x8xf32>
    %121 = arith.subf %117, %120 : vector<8x8xf32>
    %122 = math.exp %121 : vector<8x8xf32>
    %cst_47 = arith.constant dense<0.000000e+00> : vector<8xf32>
    %123 = vector.multi_reduction <add>, %122, %cst_47 [1] : vector<8x8xf32> to vector<8xf32>
    %124 = vector.shape_cast %123 : vector<8xf32> to vector<8x1xf32>
    %125 = tpu.reciprocal %124 {approx = true} : vector<8x1xf32> -> vector<8x1xf32>
    %126 = vector.broadcast %125 : vector<8x1xf32> to vector<8x8xf32>
    %127 = arith.mulf %122, %126 : vector<8x8xf32>
    %128 = arith.truncf %127 : vector<8x8xf32> to vector<8x8xbf16>
    %129 = vector.extract_strided_slice %67 {offsets = [0, 8], sizes = [8, 8], strides = [1, 1]} : vector<8x32xbf16> to vector<8x8xbf16>
    %cst_48 = arith.constant dense<0.000000e+00> : vector<8x8xf32>
    %130 = tpu.matmul %128, %129, %cst_48 {dimension_numbers = #tpu.dot_dimension_numbers<[1], [0], [0], [1], [0, 0, 1, 1], [], []>} : vector<8x8xbf16>, vector<8x8xbf16>, vector<8x8xf32> -> vector<8x8xf32>
    %131 = arith.truncf %130 : vector<8x8xf32> to vector<8x8xbf16>
    %c1 = arith.constant 1 : index
    %c0_49 = arith.constant 0 : index
    %c0_50 = arith.constant 0 : index
    %132 = vector.load %arg5[%c1, %c0_49, %c0_50] : memref<4x8x32xbf16, #tpu.memory_space<vmem>>, vector<1x8x32xbf16>
    %133 = vector.shape_cast %132 : vector<1x8x32xbf16> to vector<8x32xbf16>
    %cst_51 = arith.constant dense<0.000000e+00> : vector<8x32xf32>
    %134 = tpu.matmul %131, %133, %cst_51 {dimension_numbers = #tpu.dot_dimension_numbers<[1], [0], [0], [1], [0, 0, 1, 1], [], []>} : vector<8x8xbf16>, vector<8x32xbf16>, vector<8x32xf32> -> vector<8x32xf32>
    %135 = arith.addf %111, %134 : vector<8x32xf32>
    %136 = vector.extract_strided_slice %65 {offsets = [0, 16], sizes = [8, 8], strides = [1, 1]} : vector<8x32xbf16> to vector<8x8xbf16>
    %137 = vector.extract_strided_slice %66 {offsets = [0, 16], sizes = [8, 8], strides = [1, 1]} : vector<8x32xbf16> to vector<8x8xbf16>
    "tpu.trace_start"() <{level = 10 : i32, message = "nd,md->nm"}> : () -> ()
    %cst_52 = arith.constant dense<0.000000e+00> : vector<8x8xf32>
    %138 = tpu.matmul %136, %137, %cst_52 {dimension_numbers = #tpu.dot_dimension_numbers<[1], [1], [0], [0], [0, 0, 1, 0], [], []>} : vector<8x8xbf16>, vector<8x8xbf16>, vector<8x8xf32> -> vector<8x8xf32>
    %cst_53 = arith.constant 0xFF800000 : f32
    "tpu.trace_stop"() : () -> ()
    %139 = vector.broadcast %cst_53 : f32 to vector<8x8xf32>
    %140 = arith.select %64, %138, %139 : vector<8x8xi1>, vector<8x8xf32>
    %141 = arith.subf %140, %86 : vector<8x8xf32>
    %cst_54 = arith.constant dense<0xFF800000> : vector<8xf32>
    %142 = vector.multi_reduction <maximumf>, %141, %cst_54 [1] : vector<8x8xf32> to vector<8xf32>
    %143 = vector.shape_cast %142 : vector<8xf32> to vector<8x1xf32>
    %144 = vector.broadcast %143 : vector<8x1xf32> to vector<8x8xf32>
    %145 = arith.subf %141, %144 : vector<8x8xf32>
    %146 = math.exp %145 : vector<8x8xf32>
    %cst_55 = arith.constant dense<0.000000e+00> : vector<8xf32>
    %147 = vector.multi_reduction <add>, %146, %cst_55 [1] : vector<8x8xf32> to vector<8xf32>
    %148 = vector.shape_cast %147 : vector<8xf32> to vector<8x1xf32>
    %149 = tpu.reciprocal %148 {approx = true} : vector<8x1xf32> -> vector<8x1xf32>
    %150 = vector.broadcast %149 : vector<8x1xf32> to vector<8x8xf32>
    %151 = arith.mulf %146, %150 : vector<8x8xf32>
    %152 = arith.truncf %151 : vector<8x8xf32> to vector<8x8xbf16>
    %153 = vector.extract_strided_slice %67 {offsets = [0, 16], sizes = [8, 8], strides = [1, 1]} : vector<8x32xbf16> to vector<8x8xbf16>
    %cst_56 = arith.constant dense<0.000000e+00> : vector<8x8xf32>
    %154 = tpu.matmul %152, %153, %cst_56 {dimension_numbers = #tpu.dot_dimension_numbers<[1], [0], [0], [1], [0, 0, 1, 1], [], []>} : vector<8x8xbf16>, vector<8x8xbf16>, vector<8x8xf32> -> vector<8x8xf32>
    %155 = arith.truncf %154 : vector<8x8xf32> to vector<8x8xbf16>
    %c2 = arith.constant 2 : index
    %c0_57 = arith.constant 0 : index
    %c0_58 = arith.constant 0 : index
    %156 = vector.load %arg5[%c2, %c0_57, %c0_58] : memref<4x8x32xbf16, #tpu.memory_space<vmem>>, vector<1x8x32xbf16>
    %157 = vector.shape_cast %156 : vector<1x8x32xbf16> to vector<8x32xbf16>
    %cst_59 = arith.constant dense<0.000000e+00> : vector<8x32xf32>
    %158 = tpu.matmul %155, %157, %cst_59 {dimension_numbers = #tpu.dot_dimension_numbers<[1], [0], [0], [1], [0, 0, 1, 1], [], []>} : vector<8x8xbf16>, vector<8x32xbf16>, vector<8x32xf32> -> vector<8x32xf32>
    %159 = arith.addf %135, %158 : vector<8x32xf32>
    %160 = vector.extract_strided_slice %65 {offsets = [0, 24], sizes = [8, 8], strides = [1, 1]} : vector<8x32xbf16> to vector<8x8xbf16>
    %161 = vector.extract_strided_slice %66 {offsets = [0, 24], sizes = [8, 8], strides = [1, 1]} : vector<8x32xbf16> to vector<8x8xbf16>
    "tpu.trace_start"() <{level = 10 : i32, message = "nd,md->nm"}> : () -> ()
    %cst_60 = arith.constant dense<0.000000e+00> : vector<8x8xf32>
    %162 = tpu.matmul %160, %161, %cst_60 {dimension_numbers = #tpu.dot_dimension_numbers<[1], [1], [0], [0], [0, 0, 1, 0], [], []>} : vector<8x8xbf16>, vector<8x8xbf16>, vector<8x8xf32> -> vector<8x8xf32>
    %cst_61 = arith.constant 0xFF800000 : f32
    "tpu.trace_stop"() : () -> ()
    %163 = vector.broadcast %cst_61 : f32 to vector<8x8xf32>
    %164 = arith.select %64, %162, %163 : vector<8x8xi1>, vector<8x8xf32>
    %165 = arith.subf %164, %86 : vector<8x8xf32>
    %cst_62 = arith.constant dense<0xFF800000> : vector<8xf32>
    %166 = vector.multi_reduction <maximumf>, %165, %cst_62 [1] : vector<8x8xf32> to vector<8xf32>
    %167 = vector.shape_cast %166 : vector<8xf32> to vector<8x1xf32>
    %168 = vector.broadcast %167 : vector<8x1xf32> to vector<8x8xf32>
    %169 = arith.subf %165, %168 : vector<8x8xf32>
    %170 = math.exp %169 : vector<8x8xf32>
    %cst_63 = arith.constant dense<0.000000e+00> : vector<8xf32>
    %171 = vector.multi_reduction <add>, %170, %cst_63 [1] : vector<8x8xf32> to vector<8xf32>
    %172 = vector.shape_cast %171 : vector<8xf32> to vector<8x1xf32>
    %173 = tpu.reciprocal %172 {approx = true} : vector<8x1xf32> -> vector<8x1xf32>
    %174 = vector.broadcast %173 : vector<8x1xf32> to vector<8x8xf32>
    %175 = arith.mulf %170, %174 : vector<8x8xf32>
    %176 = arith.truncf %175 : vector<8x8xf32> to vector<8x8xbf16>
    %177 = vector.extract_strided_slice %67 {offsets = [0, 24], sizes = [8, 8], strides = [1, 1]} : vector<8x32xbf16> to vector<8x8xbf16>
    %cst_64 = arith.constant dense<0.000000e+00> : vector<8x8xf32>
    %178 = tpu.matmul %176, %177, %cst_64 {dimension_numbers = #tpu.dot_dimension_numbers<[1], [0], [0], [1], [0, 0, 1, 1], [], []>} : vector<8x8xbf16>, vector<8x8xbf16>, vector<8x8xf32> -> vector<8x8xf32>
    %179 = arith.truncf %178 : vector<8x8xf32> to vector<8x8xbf16>
    %c3 = arith.constant 3 : index
    %c0_65 = arith.constant 0 : index
    %c0_66 = arith.constant 0 : index
    %180 = vector.load %arg5[%c3, %c0_65, %c0_66] : memref<4x8x32xbf16, #tpu.memory_space<vmem>>, vector<1x8x32xbf16>
    %181 = vector.shape_cast %180 : vector<1x8x32xbf16> to vector<8x32xbf16>
    %cst_67 = arith.constant dense<0.000000e+00> : vector<8x32xf32>
    %182 = tpu.matmul %179, %181, %cst_67 {dimension_numbers = #tpu.dot_dimension_numbers<[1], [0], [0], [1], [0, 0, 1, 1], [], []>} : vector<8x8xbf16>, vector<8x32xbf16>, vector<8x32xf32> -> vector<8x32xf32>
    %183 = arith.addf %159, %182 : vector<8x32xf32>
    %c0_68 = arith.constant 0 : index
    %c0_69 = arith.constant 0 : index
    %c0_70 = arith.constant 0 : index
    %184 = vector.load %arg10[%c0_68, %c0_69, %c0_70] : memref<2x8x32xf32, #tpu.memory_space<vmem>>, vector<1x8x32xf32>
    %185 = vector.shape_cast %184 : vector<1x8x32xf32> to vector<8x32xf32>
    %186 = vector.shape_cast %183 : vector<8x32xf32> to vector<1x8x32xf32>
    tpu.vector_store %arg10[%c0_68, %c0_69, %c0_70], %186 {strides = array<i32>} : memref<2x8x32xf32, #tpu.memory_space<vmem>>, vector<1x8x32xf32>,
    %c0_71 = arith.constant 0 : index
    %c0_72 = arith.constant 0 : index
    %c0_73 = arith.constant 0 : index
    %187 = vector.load %arg11[%c0_71, %c0_72, %c0_73] : memref<2x8x8xf32, #tpu.memory_space<vmem>>, vector<1x8x8xf32>
    %188 = vector.shape_cast %187 : vector<1x8x8xf32> to vector<8x8xf32>
    %189 = vector.shape_cast %86 : vector<8x8xf32> to vector<1x8x8xf32>
    tpu.vector_store %arg11[%c0_71, %c0_72, %c0_73], %189 {strides = array<i32>} : memref<2x8x8xf32, #tpu.memory_space<vmem>>, vector<1x8x8xf32>,
    %190 = vector.extract_strided_slice %59 {offsets = [8, 0], sizes = [8, 32], strides = [1, 1]} : vector<16x32xbf16> to vector<8x32xbf16>
    %191 = vector.extract_strided_slice %60 {offsets = [8, 0], sizes = [8, 32], strides = [1, 1]} : vector<16x32xbf16> to vector<8x32xbf16>
    %192 = vector.extract_strided_slice %61 {offsets = [8, 0], sizes = [8, 32], strides = [1, 1]} : vector<16x32xbf16> to vector<8x32xbf16>
    %193 = vector.extract_strided_slice %190 {offsets = [0, 0], sizes = [8, 8], strides = [1, 1]} : vector<8x32xbf16> to vector<8x8xbf16>
    %194 = vector.extract_strided_slice %191 {offsets = [0, 0], sizes = [8, 8], strides = [1, 1]} : vector<8x32xbf16> to vector<8x8xbf16>
    "tpu.trace_start"() <{level = 10 : i32, message = "nd,md->nm"}> : () -> ()
    %cst_74 = arith.constant dense<0.000000e+00> : vector<8x8xf32>
    %195 = tpu.matmul %193, %194, %cst_74 {dimension_numbers = #tpu.dot_dimension_numbers<[1], [1], [0], [0], [0, 0, 1, 0], [], []>} : vector<8x8xbf16>, vector<8x8xbf16>, vector<8x8xf32> -> vector<8x8xf32>
    %cst_75 = arith.constant 0xFF800000 : f32
    "tpu.trace_stop"() : () -> ()
    %196 = vector.broadcast %cst_75 : f32 to vector<8x8xf32>
    %197 = arith.select %64, %195, %196 : vector<8x8xi1>, vector<8x8xf32>
    %cst_76 = arith.constant 0.000000e+00 : f32
    %198 = vector.broadcast %cst_76 : f32 to vector<8x8xf32>
    %199 = arith.maximumf %197, %198 : vector<8x8xf32>
    %c0_i32_77 = arith.constant 0 : i32
    %200 = vector.broadcast %c0_i32_77 : i32 to vector<8x8xi32>
    %201 = arith.cmpi eq, %63, %200 : vector<8x8xi32>
    %202 = arith.cmpi eq, %63, %62 : vector<8x8xi32>
    %203 = arith.ori %201, %202 : vector<8x8xi1>
    %cst_78 = arith.constant 0.000000e+00 : f32
    %204 = vector.broadcast %cst_78 : f32 to vector<8x8xf32>
    %205 = arith.select %203, %204, %199 : vector<8x8xi1>, vector<8x8xf32>
    %206 = tpu.iota {dimensions = array<i32: 0>} : vector<8x8xi32>
    %207 = tpu.iota {dimensions = array<i32: 1>} : vector<8x8xi32>
    %208 = arith.cmpi slt, %207, %206 : vector<8x8xi32>
    %209 = arith.extui %208 : vector<8x8xi1> to vector<8x8xi32>
    %210 = arith.sitofp %209 : vector<8x8xi32> to vector<8x8xf32>
    %cst_79 = arith.constant dense<0.000000e+00> : vector<8x8xf32>
    %211 = tpu.matmul %210, %205, %cst_79 {dimension_numbers = #tpu.dot_dimension_numbers<[1], [0], [0], [1], [0, 0, 1, 1], [], []>} : vector<8x8xf32>, vector<8x8xf32>, vector<8x8xf32> -> vector<8x8xf32>
    %cst_80 = arith.constant 0.000000e+00 : f32
    %212 = vector.broadcast %cst_80 : f32 to vector<8x32xf32>
    %213 = vector.extract_strided_slice %190 {offsets = [0, 0], sizes = [8, 8], strides = [1, 1]} : vector<8x32xbf16> to vector<8x8xbf16>
    %214 = vector.extract_strided_slice %191 {offsets = [0, 0], sizes = [8, 8], strides = [1, 1]} : vector<8x32xbf16> to vector<8x8xbf16>
    "tpu.trace_start"() <{level = 10 : i32, message = "nd,md->nm"}> : () -> ()
    %cst_81 = arith.constant dense<0.000000e+00> : vector<8x8xf32>
    %215 = tpu.matmul %213, %214, %cst_81 {dimension_numbers = #tpu.dot_dimension_numbers<[1], [1], [0], [0], [0, 0, 1, 0], [], []>} : vector<8x8xbf16>, vector<8x8xbf16>, vector<8x8xf32> -> vector<8x8xf32>
    %cst_82 = arith.constant 0xFF800000 : f32
    "tpu.trace_stop"() : () -> ()
    %216 = vector.broadcast %cst_82 : f32 to vector<8x8xf32>
    %217 = arith.select %64, %215, %216 : vector<8x8xi1>, vector<8x8xf32>
    %218 = arith.subf %217, %211 : vector<8x8xf32>
    %cst_83 = arith.constant dense<0xFF800000> : vector<8xf32>
    %219 = vector.multi_reduction <maximumf>, %218, %cst_83 [1] : vector<8x8xf32> to vector<8xf32>
    %220 = vector.shape_cast %219 : vector<8xf32> to vector<8x1xf32>
    %221 = vector.broadcast %220 : vector<8x1xf32> to vector<8x8xf32>
    %222 = arith.subf %218, %221 : vector<8x8xf32>
    %223 = math.exp %222 : vector<8x8xf32>
    %cst_84 = arith.constant dense<0.000000e+00> : vector<8xf32>
    %224 = vector.multi_reduction <add>, %223, %cst_84 [1] : vector<8x8xf32> to vector<8xf32>
    %225 = vector.shape_cast %224 : vector<8xf32> to vector<8x1xf32>
    %226 = tpu.reciprocal %225 {approx = true} : vector<8x1xf32> -> vector<8x1xf32>
    %227 = vector.broadcast %226 : vector<8x1xf32> to vector<8x8xf32>
    %228 = arith.mulf %223, %227 : vector<8x8xf32>
    %229 = arith.truncf %228 : vector<8x8xf32> to vector<8x8xbf16>
    %230 = vector.extract_strided_slice %192 {offsets = [0, 0], sizes = [8, 8], strides = [1, 1]} : vector<8x32xbf16> to vector<8x8xbf16>
    %cst_85 = arith.constant dense<0.000000e+00> : vector<8x8xf32>
    %231 = tpu.matmul %229, %230, %cst_85 {dimension_numbers = #tpu.dot_dimension_numbers<[1], [0], [0], [1], [0, 0, 1, 1], [], []>} : vector<8x8xbf16>, vector<8x8xbf16>, vector<8x8xf32> -> vector<8x8xf32>
    %232 = arith.truncf %231 : vector<8x8xf32> to vector<8x8xbf16>
    %c0_86 = arith.constant 0 : index
    %c0_87 = arith.constant 0 : index
    %c0_88 = arith.constant 0 : index
    %233 = vector.load %arg5[%c0_86, %c0_87, %c0_88] : memref<4x8x32xbf16, #tpu.memory_space<vmem>>, vector<1x8x32xbf16>
    %234 = vector.shape_cast %233 : vector<1x8x32xbf16> to vector<8x32xbf16>
    %cst_89 = arith.constant dense<0.000000e+00> : vector<8x32xf32>
    %235 = tpu.matmul %232, %234, %cst_89 {dimension_numbers = #tpu.dot_dimension_numbers<[1], [0], [0], [1], [0, 0, 1, 1], [], []>} : vector<8x8xbf16>, vector<8x32xbf16>, vector<8x32xf32> -> vector<8x32xf32>
    %236 = arith.addf %212, %235 : vector<8x32xf32>
    %237 = vector.extract_strided_slice %190 {offsets = [0, 8], sizes = [8, 8], strides = [1, 1]} : vector<8x32xbf16> to vector<8x8xbf16>
    %238 = vector.extract_strided_slice %191 {offsets = [0, 8], sizes = [8, 8], strides = [1, 1]} : vector<8x32xbf16> to vector<8x8xbf16>
    "tpu.trace_start"() <{level = 10 : i32, message = "nd,md->nm"}> : () -> ()
    %cst_90 = arith.constant dense<0.000000e+00> : vector<8x8xf32>
    %239 = tpu.matmul %237, %238, %cst_90 {dimension_numbers = #tpu.dot_dimension_numbers<[1], [1], [0], [0], [0, 0, 1, 0], [], []>} : vector<8x8xbf16>, vector<8x8xbf16>, vector<8x8xf32> -> vector<8x8xf32>
    %cst_91 = arith.constant 0xFF800000 : f32
    "tpu.trace_stop"() : () -> ()
    %240 = vector.broadcast %cst_91 : f32 to vector<8x8xf32>
    %241 = arith.select %64, %239, %240 : vector<8x8xi1>, vector<8x8xf32>
    %242 = arith.subf %241, %211 : vector<8x8xf32>
    %cst_92 = arith.constant dense<0xFF800000> : vector<8xf32>
    %243 = vector.multi_reduction <maximumf>, %242, %cst_92 [1] : vector<8x8xf32> to vector<8xf32>
    %244 = vector.shape_cast %243 : vector<8xf32> to vector<8x1xf32>
    %245 = vector.broadcast %244 : vector<8x1xf32> to vector<8x8xf32>
    %246 = arith.subf %242, %245 : vector<8x8xf32>
    %247 = math.exp %246 : vector<8x8xf32>
    %cst_93 = arith.constant dense<0.000000e+00> : vector<8xf32>
    %248 = vector.multi_reduction <add>, %247, %cst_93 [1] : vector<8x8xf32> to vector<8xf32>
    %249 = vector.shape_cast %248 : vector<8xf32> to vector<8x1xf32>
    %250 = tpu.reciprocal %249 {approx = true} : vector<8x1xf32> -> vector<8x1xf32>
    %251 = vector.broadcast %250 : vector<8x1xf32> to vector<8x8xf32>
    %252 = arith.mulf %247, %251 : vector<8x8xf32>
    %253 = arith.truncf %252 : vector<8x8xf32> to vector<8x8xbf16>
    %254 = vector.extract_strided_slice %192 {offsets = [0, 8], sizes = [8, 8], strides = [1, 1]} : vector<8x32xbf16> to vector<8x8xbf16>
    %cst_94 = arith.constant dense<0.000000e+00> : vector<8x8xf32>
    %255 = tpu.matmul %253, %254, %cst_94 {dimension_numbers = #tpu.dot_dimension_numbers<[1], [0], [0], [1], [0, 0, 1, 1], [], []>} : vector<8x8xbf16>, vector<8x8xbf16>, vector<8x8xf32> -> vector<8x8xf32>
    %256 = arith.truncf %255 : vector<8x8xf32> to vector<8x8xbf16>
    %c1_95 = arith.constant 1 : index
    %c0_96 = arith.constant 0 : index
    %c0_97 = arith.constant 0 : index
    %257 = vector.load %arg5[%c1_95, %c0_96, %c0_97] : memref<4x8x32xbf16, #tpu.memory_space<vmem>>, vector<1x8x32xbf16>
    %258 = vector.shape_cast %257 : vector<1x8x32xbf16> to vector<8x32xbf16>
    %cst_98 = arith.constant dense<0.000000e+00> : vector<8x32xf32>
    %259 = tpu.matmul %256, %258, %cst_98 {dimension_numbers = #tpu.dot_dimension_numbers<[1], [0], [0], [1], [0, 0, 1, 1], [], []>} : vector<8x8xbf16>, vector<8x32xbf16>, vector<8x32xf32> -> vector<8x32xf32>
    %260 = arith.addf %236, %259 : vector<8x32xf32>
    %261 = vector.extract_strided_slice %190 {offsets = [0, 16], sizes = [8, 8], strides = [1, 1]} : vector<8x32xbf16> to vector<8x8xbf16>
    %262 = vector.extract_strided_slice %191 {offsets = [0, 16], sizes = [8, 8], strides = [1, 1]} : vector<8x32xbf16> to vector<8x8xbf16>
    "tpu.trace_start"() <{level = 10 : i32, message = "nd,md->nm"}> : () -> ()
    %cst_99 = arith.constant dense<0.000000e+00> : vector<8x8xf32>
    %263 = tpu.matmul %261, %262, %cst_99 {dimension_numbers = #tpu.dot_dimension_numbers<[1], [1], [0], [0], [0, 0, 1, 0], [], []>} : vector<8x8xbf16>, vector<8x8xbf16>, vector<8x8xf32> -> vector<8x8xf32>
    %cst_100 = arith.constant 0xFF800000 : f32
    "tpu.trace_stop"() : () -> ()
    %264 = vector.broadcast %cst_100 : f32 to vector<8x8xf32>
    %265 = arith.select %64, %263, %264 : vector<8x8xi1>, vector<8x8xf32>
    %266 = arith.subf %265, %211 : vector<8x8xf32>
    %cst_101 = arith.constant dense<0xFF800000> : vector<8xf32>
    %267 = vector.multi_reduction <maximumf>, %266, %cst_101 [1] : vector<8x8xf32> to vector<8xf32>
    %268 = vector.shape_cast %267 : vector<8xf32> to vector<8x1xf32>
    %269 = vector.broadcast %268 : vector<8x1xf32> to vector<8x8xf32>
    %270 = arith.subf %266, %269 : vector<8x8xf32>
    %271 = math.exp %270 : vector<8x8xf32>
    %cst_102 = arith.constant dense<0.000000e+00> : vector<8xf32>
    %272 = vector.multi_reduction <add>, %271, %cst_102 [1] : vector<8x8xf32> to vector<8xf32>
    %273 = vector.shape_cast %272 : vector<8xf32> to vector<8x1xf32>
    %274 = tpu.reciprocal %273 {approx = true} : vector<8x1xf32> -> vector<8x1xf32>
    %275 = vector.broadcast %274 : vector<8x1xf32> to vector<8x8xf32>
    %276 = arith.mulf %271, %275 : vector<8x8xf32>
    %277 = arith.truncf %276 : vector<8x8xf32> to vector<8x8xbf16>
    %278 = vector.extract_strided_slice %192 {offsets = [0, 16], sizes = [8, 8], strides = [1, 1]} : vector<8x32xbf16> to vector<8x8xbf16>
    %cst_103 = arith.constant dense<0.000000e+00> : vector<8x8xf32>
    %279 = tpu.matmul %277, %278, %cst_103 {dimension_numbers = #tpu.dot_dimension_numbers<[1], [0], [0], [1], [0, 0, 1, 1], [], []>} : vector<8x8xbf16>, vector<8x8xbf16>, vector<8x8xf32> -> vector<8x8xf32>
    %280 = arith.truncf %279 : vector<8x8xf32> to vector<8x8xbf16>
    %c2_104 = arith.constant 2 : index
    %c0_105 = arith.constant 0 : index
    %c0_106 = arith.constant 0 : index
    %281 = vector.load %arg5[%c2_104, %c0_105, %c0_106] : memref<4x8x32xbf16, #tpu.memory_space<vmem>>, vector<1x8x32xbf16>
    %282 = vector.shape_cast %281 : vector<1x8x32xbf16> to vector<8x32xbf16>
    %cst_107 = arith.constant dense<0.000000e+00> : vector<8x32xf32>
    %283 = tpu.matmul %280, %282, %cst_107 {dimension_numbers = #tpu.dot_dimension_numbers<[1], [0], [0], [1], [0, 0, 1, 1], [], []>} : vector<8x8xbf16>, vector<8x32xbf16>, vector<8x32xf32> -> vector<8x32xf32>
    %284 = arith.addf %260, %283 : vector<8x32xf32>
    %285 = vector.extract_strided_slice %190 {offsets = [0, 24], sizes = [8, 8], strides = [1, 1]} : vector<8x32xbf16> to vector<8x8xbf16>
    %286 = vector.extract_strided_slice %191 {offsets = [0, 24], sizes = [8, 8], strides = [1, 1]} : vector<8x32xbf16> to vector<8x8xbf16>
    "tpu.trace_start"() <{level = 10 : i32, message = "nd,md->nm"}> : () -> ()
    %cst_108 = arith.constant dense<0.000000e+00> : vector<8x8xf32>
    %287 = tpu.matmul %285, %286, %cst_108 {dimension_numbers = #tpu.dot_dimension_numbers<[1], [1], [0], [0], [0, 0, 1, 0], [], []>} : vector<8x8xbf16>, vector<8x8xbf16>, vector<8x8xf32> -> vector<8x8xf32>
    %cst_109 = arith.constant 0xFF800000 : f32
    "tpu.trace_stop"() : () -> ()
    %288 = vector.broadcast %cst_109 : f32 to vector<8x8xf32>
    %289 = arith.select %64, %287, %288 : vector<8x8xi1>, vector<8x8xf32>
    %290 = arith.subf %289, %211 : vector<8x8xf32>
    %cst_110 = arith.constant dense<0xFF800000> : vector<8xf32>
    %291 = vector.multi_reduction <maximumf>, %290, %cst_110 [1] : vector<8x8xf32> to vector<8xf32>
    %292 = vector.shape_cast %291 : vector<8xf32> to vector<8x1xf32>
    %293 = vector.broadcast %292 : vector<8x1xf32> to vector<8x8xf32>
    %294 = arith.subf %290, %293 : vector<8x8xf32>
    %295 = math.exp %294 : vector<8x8xf32>
    %cst_111 = arith.constant dense<0.000000e+00> : vector<8xf32>
    %296 = vector.multi_reduction <add>, %295, %cst_111 [1] : vector<8x8xf32> to vector<8xf32>
    %297 = vector.shape_cast %296 : vector<8xf32> to vector<8x1xf32>
    %298 = tpu.reciprocal %297 {approx = true} : vector<8x1xf32> -> vector<8x1xf32>
    %299 = vector.broadcast %298 : vector<8x1xf32> to vector<8x8xf32>
    %300 = arith.mulf %295, %299 : vector<8x8xf32>
    %301 = arith.truncf %300 : vector<8x8xf32> to vector<8x8xbf16>
    %302 = vector.extract_strided_slice %192 {offsets = [0, 24], sizes = [8, 8], strides = [1, 1]} : vector<8x32xbf16> to vector<8x8xbf16>
    %cst_112 = arith.constant dense<0.000000e+00> : vector<8x8xf32>
    %303 = tpu.matmul %301, %302, %cst_112 {dimension_numbers = #tpu.dot_dimension_numbers<[1], [0], [0], [1], [0, 0, 1, 1], [], []>} : vector<8x8xbf16>, vector<8x8xbf16>, vector<8x8xf32> -> vector<8x8xf32>
    %304 = arith.truncf %303 : vector<8x8xf32> to vector<8x8xbf16>
    %c3_113 = arith.constant 3 : index
    %c0_114 = arith.constant 0 : index
    %c0_115 = arith.constant 0 : index
    %305 = vector.load %arg5[%c3_113, %c0_114, %c0_115] : memref<4x8x32xbf16, #tpu.memory_space<vmem>>, vector<1x8x32xbf16>
    %306 = vector.shape_cast %305 : vector<1x8x32xbf16> to vector<8x32xbf16>
    %cst_116 = arith.constant dense<0.000000e+00> : vector<8x32xf32>
    %307 = tpu.matmul %304, %306, %cst_116 {dimension_numbers = #tpu.dot_dimension_numbers<[1], [0], [0], [1], [0, 0, 1, 1], [], []>} : vector<8x8xbf16>, vector<8x32xbf16>, vector<8x32xf32> -> vector<8x32xf32>
    %308 = arith.addf %284, %307 : vector<8x32xf32>
    %c1_117 = arith.constant 1 : index
    %c0_118 = arith.constant 0 : index
    %c0_119 = arith.constant 0 : index
    %309 = vector.load %arg10[%c1_117, %c0_118, %c0_119] : memref<2x8x32xf32, #tpu.memory_space<vmem>>, vector<1x8x32xf32>
    %310 = vector.shape_cast %309 : vector<1x8x32xf32> to vector<8x32xf32>
    %311 = vector.shape_cast %308 : vector<8x32xf32> to vector<1x8x32xf32>
    tpu.vector_store %arg10[%c1_117, %c0_118, %c0_119], %311 {strides = array<i32>} : memref<2x8x32xf32, #tpu.memory_space<vmem>>, vector<1x8x32xf32>,
    %c1_120 = arith.constant 1 : index
    %c0_121 = arith.constant 0 : index
    %c0_122 = arith.constant 0 : index
    %312 = vector.load %arg11[%c1_120, %c0_121, %c0_122] : memref<2x8x8xf32, #tpu.memory_space<vmem>>, vector<1x8x8xf32>
    %313 = vector.shape_cast %312 : vector<1x8x8xf32> to vector<8x8xf32>
    %314 = vector.shape_cast %211 : vector<8x8xf32> to vector<1x8x8xf32>
    tpu.vector_store %arg11[%c1_120, %c0_121, %c0_122], %314 {strides = array<i32>} : memref<2x8x8xf32, #tpu.memory_space<vmem>>, vector<1x8x8xf32>,
    return
  }
  func.func @transform_0(%arg0: i32) -> (i32, i32, i32) {
    %c0_i32 = arith.constant 0 : i32
    %c0_i32_0 = arith.constant 0 : i32
    %c0_i32_1 = arith.constant 0 : i32
    return %arg0, %c0_i32, %c0_i32_0 : i32, i32, i32
  }
  func.func @transform_1(%arg0: i32) -> (i32, i32) {
    %c0_i32 = arith.constant 0 : i32
    %c0_i32_0 = arith.constant 0 : i32
    %c0_i32_1 = arith.constant 0 : i32
    return %c0_i32, %c0_i32_0 : i32, i32
  }
  func.func @transform_2(%arg0: i32) -> (i32, i32) {
    %c0_i32 = arith.constant 0 : i32
    %c0_i32_0 = arith.constant 0 : i32
    %c0_i32_1 = arith.constant 0 : i32
    return %c0_i32, %c0_i32_0 : i32, i32
  }
  func.func @transform_3(%arg0: i32) -> (i32, i32) {
    %c0_i32 = arith.constant 0 : i32
    %c0_i32_0 = arith.constant 0 : i32
    %c0_i32_1 = arith.constant 0 : i32
    return %c0_i32, %c0_i32_0 : i32, i32
  }
  func.func @transform_4(%arg0: i32) -> (i32, i32, i32) {
    %c0_i32 = arith.constant 0 : i32
    %c0_i32_0 = arith.constant 0 : i32
    %c0_i32_1 = arith.constant 0 : i32
    %c0_i32_2 = arith.constant 0 : i32
    return %c0_i32, %c0_i32_0, %c0_i32_1 : i32, i32, i32
  }
  func.func @transform_5(%arg0: i32) -> (i32, i32) {
    %c0_i32 = arith.constant 0 : i32
    %c0_i32_0 = arith.constant 0 : i32
    %c0_i32_1 = arith.constant 0 : i32
    return %c0_i32, %c0_i32_0 : i32, i32
  }
  func.func @transform_6(%arg0: i32) -> (i32, i32) {
    %c0_i32 = arith.constant 0 : i32
    %c0_i32_0 = arith.constant 0 : i32
    %c0_i32_1 = arith.constant 0 : i32
    return %c0_i32, %c0_i32_0 : i32, i32
  }
  func.func @transform_7(%arg0: i32) -> (i32, i32) {
    %c0_i32 = arith.constant 0 : i32
    %c0_i32_0 = arith.constant 0 : i32
    %c0_i32_1 = arith.constant 0 : i32
    return %c0_i32, %c0_i32_0 : i32, i32
  }
  func.func @transform_8(%arg0: i32) -> (i32, i32) {
    %c0_i32 = arith.constant 0 : i32
    %c0_i32_0 = arith.constant 0 : i32
    %c0_i32_1 = arith.constant 0 : i32
    return %c0_i32, %c0_i32_0 : i32, i32
  }
  func.func @transform_9(%arg0: i32) -> (i32, i32, i32) {
    %c0_i32 = arith.constant 0 : i32
    %c0_i32_0 = arith.constant 0 : i32
    %c0_i32_1 = arith.constant 0 : i32
    return %arg0, %c0_i32, %c0_i32_0 : i32, i32, i32
  }
  func.func @transform_10(%arg0: i32) -> (i32, i32, i32) {
    %c0_i32 = arith.constant 0 : i32
    %c0_i32_0 = arith.constant 0 : i32
    %c0_i32_1 = arith.constant 0 : i32
    return %arg0, %c0_i32, %c0_i32_0 : i32, i32, i32
  }
}

</mosaic_0001>

<llo_original>
// kernel: tpu_custom_call.1
$region0: #{tpu_custom_call.1}
  #allocation0 [shape = 'u32[]', space=smem, size = 0x4, offset = 0x4, fixed_abs, tag = 'smem constant byte address 0x4 - core index']
  #allocation1 [shape = 'u32[144,128]{1,0:T(1,128)}', space=vmem, size = 0x12000, scoped, tag = 'internal scratch']
  %s0 = inlined_call_operand.hbm [shape: f32[2,8,32], index: 0, kind: input, shape index: {}]
  %s1 = inlined_call_operand.hbm [shape: bf16[32,32], index: 1, kind: input, shape index: {}]
  %s2 = inlined_call_operand.hbm [shape: bf16[32,32], index: 2, kind: input, shape index: {}]
  %s3 = inlined_call_operand.hbm [shape: bf16[32,32], index: 3, kind: input, shape index: {}]
  %s4 = inlined_call_operand.hbm [shape: bf16[4,8,32], index: 4, kind: input, shape index: {}]
  %s5 = inlined_call_operand.vmem [shape: f32[1,32], index: 5, kind: input, shape index: {}]
  %s6 = inlined_call_operand.vmem [shape: f32[1,32], index: 6, kind: input, shape index: {}]
  %s7 = inlined_call_operand.vmem [shape: f32[1,32], index: 7, kind: input, shape index: {}]
  %s8 = inlined_call_operand.vmem [shape: f32[1,32], index: 8, kind: input, shape index: {}]
  %s9 = inlined_call_operand.hbm [shape: f32[2,8,32], index: 9, kind: output, shape index: {0}]
  %s10 = inlined_call_operand.hbm [shape: f32[2,8,8], index: 10, kind: output, shape index: {1}]
  %11 = xla_tuple %s9, %s10
  %s12 = sld [smem:[#allocation0]]
  $region74: #{tpu_custom_call.1} parent=0
    _
  %s14 = ssub.s32 1, %s12
  %s15 = scalar_select 0, %s14, %s12
  $region1: #{tpu_custom_call.1} parent=0
    #allocation2 [shape = 'u8[8192]{0}', space=vmem, size = 0x2000, scoped, tag = 'input window, operand 0, single buffered']
    #allocation3 [shape = 's32[1]{0}', space=sflag, size = 0x4, scoped, tag = 'scoped memory for tpu_custom_call.1']
    #allocation4 [shape = 's32[1]{0}', space=sflag, size = 0x4, scoped, tag = 'scoped memory for tpu_custom_call.1']
    #allocation5 [shape = 'u8[8192]{0}', space=vmem, size = 0x2000, scoped, tag = 'input window, operand 1, single buffered']
    #allocation6 [shape = 's32[1]{0}', space=sflag, size = 0x4, scoped, tag = 'scoped memory for tpu_custom_call.1']
    #allocation7 [shape = 'u8[8192]{0}', space=vmem, size = 0x2000, scoped, tag = 'input window, operand 2, single buffered']
    #allocation8 [shape = 'u8[8192]{0}', space=vmem, size = 0x2000, scoped, tag = 'input window, operand 3, single buffered']
    #allocation9 [shape = 's32[1]{0}', space=sflag, size = 0x4, scoped, tag = 'scoped memory for tpu_custom_call.1']
    #allocation10 [shape = 'u8[8192]{0}', space=vmem, size = 0x2000, scoped, tag = 'input window, operand 4, single buffered']
    #allocation11 [shape = 'u8[8192]{0}', space=vmem, size = 0x2000, scoped, tag = 'output window, operand 0, single buffered']
    #allocation12 [shape = 'u8[8192]{0}', space=vmem, size = 0x2000, scoped, tag = 'output window, operand 1, single buffered']
    #allocation13 [shape = 's32[1]{0}', space=sflag, size = 0x4, scoped, tag = 'scoped memory for tpu_custom_call.1']
    %16 = vsyncpa [#allocation3], 0
    %17 = vsyncpa [#allocation6], 0
    %18 = vsyncpa [#allocation9], 0
    %19 = vsyncpa [#allocation4], 0
    %20 = vsyncpa [#allocation13], 0
    // Predicated region
    $region2: #{tpu_custom_call.1} parent=1 // pred_check
      _
    $region3: #{tpu_custom_call.1} parent=1 // pred_check_branch
      %22 = sbr.rel (0) target = $region5
    $region4: #{tpu_custom_call.1} parent=1 // pred_region
      %s24 = ssub.s32 256, 256
      %25 = vsyncadd [#allocation3], %s24
      %s26 = sshll.u32 [#allocation2], 4
      %s27 = int_to_ptr.vmem [resolvable:$true] %s26
      %32 = dma.hbm_to_vmem [thread:$0]  %s0, 256, %s27, [#allocation3], 128, 128, 8
    $region5: #{tpu_custom_call.1} parent=1 // pred_fallthru
      _
    // Predicated region
    $region6: #{tpu_custom_call.1} parent=1 // pred_check
      _
    $region7: #{tpu_custom_call.1} parent=1 // pred_check_branch
      %34 = sbr.rel (0) target = $region9
    $region8: #{tpu_custom_call.1} parent=1 // pred_region
      %s36 = ssub.s32 256, 256
      %37 = vsyncadd [#allocation6], %s36
      %s38 = sshll.u32 [#allocation5], 4
      %s39 = int_to_ptr.vmem [resolvable:$true] %s38
      %44 = dma.hbm_to_vmem [thread:$0]  %s1, 256, %s39, [#allocation6], 64, 64, 4
    $region9: #{tpu_custom_call.1} parent=1 // pred_fallthru
      _
    // Predicated region
    $region10: #{tpu_custom_call.1} parent=1 // pred_check
      _
    $region11: #{tpu_custom_call.1} parent=1 // pred_check_branch
      %46 = sbr.rel (0) target = $region13
    $region12: #{tpu_custom_call.1} parent=1 // pred_region
      %s48 = ssub.s32 256, 256
      %49 = vsyncadd [#allocation6], %s48
      %s50 = sshll.u32 [#allocation7], 4
      %s51 = int_to_ptr.vmem [resolvable:$true] %s50
      %56 = dma.hbm_to_vmem [thread:$0]  %s2, 256, %s51, [#allocation6], 64, 64, 4
    $region13: #{tpu_custom_call.1} parent=1 // pred_fallthru
      _
    // Predicated region
    $region14: #{tpu_custom_call.1} parent=1 // pred_check
      _
    $region15: #{tpu_custom_call.1} parent=1 // pred_check_branch
      %58 = sbr.rel (0) target = $region17
    $region16: #{tpu_custom_call.1} parent=1 // pred_region
      %s60 = ssub.s32 256, 256
      %61 = vsyncadd [#allocation9], %s60
      %s62 = sshll.u32 [#allocation8], 4
      %s63 = int_to_ptr.vmem [resolvable:$true] %s62
      %68 = dma.hbm_to_vmem [thread:$0]  %s3, 256, %s63, [#allocation9], 64, 64, 4
    $region17: #{tpu_custom_call.1} parent=1 // pred_fallthru
      _
    // Predicated region
    $region18: #{tpu_custom_call.1} parent=1 // pred_check
      _
    $region19: #{tpu_custom_call.1} parent=1 // pred_check_branch
      %70 = sbr.rel (0) target = $region21
    $region20: #{tpu_custom_call.1} parent=1 // pred_region
      %s72 = ssub.s32 256, 256
      %73 = vsyncadd [#allocation9], %s72
      %s74 = sshll.u32 [#allocation10], 4
      %s75 = int_to_ptr.vmem [resolvable:$true] %s74
      %80 = dma.hbm_to_vmem [thread:$0]  %s4, 256, %s75, [#allocation9], 64, 64, 4
    $region21: #{tpu_custom_call.1} parent=1 // pred_fallthru
      _
    // Predicated region
    $region22: #{tpu_custom_call.1} parent=1 // pred_check
      _
    $region23: #{tpu_custom_call.1} parent=1 // pred_check_branch
      %82 = sbr.rel (0) target = $region25
    $region24: #{tpu_custom_call.1} parent=1 // pred_region
      _
    $region25: #{tpu_custom_call.1} parent=1 // pred_fallthru
      _
    // Predicated region
    $region26: #{tpu_custom_call.1} parent=1 // pred_check
      _
    $region27: #{tpu_custom_call.1} parent=1 // pred_check_branch
      %84 = sbr.rel (0) target = $region29
    $region28: #{tpu_custom_call.1} parent=1 // pred_region
      _
    $region29: #{tpu_custom_call.1} parent=1 // pred_fallthru
      _
    // Predicated region
    $region30: #{tpu_custom_call.1} parent=1 // pred_check
      _
    $region31: #{tpu_custom_call.1} parent=1 // pred_check_branch
      %86 = sbr.rel (0) target = $region33
    $region32: #{tpu_custom_call.1} parent=1 // pred_region
      _
    $region33: #{tpu_custom_call.1} parent=1 // pred_fallthru
      _
    // Predicated region
    $region34: #{tpu_custom_call.1} parent=1 // pred_check
      _
    $region35: #{tpu_custom_call.1} parent=1 // pred_check_branch
      %88 = sbr.rel (0) target = $region37
    $region36: #{tpu_custom_call.1} parent=1 // pred_region
      _
    $region37: #{tpu_custom_call.1} parent=1 // pred_fallthru
      _
    // Predicated region
    $region38: #{tpu_custom_call.1} parent=1 // pred_check
      _
    $region39: #{tpu_custom_call.1} parent=1 // pred_check_branch
      %90 = sbr.rel (0) target = $region41
    $region40: #{tpu_custom_call.1} parent=1 // pred_region
      %91 = dma.done [#allocation3], 256
    $region41: #{tpu_custom_call.1} parent=1 // pred_fallthru
      _
    // Predicated region
    $region42: #{tpu_custom_call.1} parent=1 // pred_check
      _
    $region43: #{tpu_custom_call.1} parent=1 // pred_check_branch
      %93 = sbr.rel (0) target = $region45
    $region44: #{tpu_custom_call.1} parent=1 // pred_region
      %94 = dma.done [#allocation6], 256
    $region45: #{tpu_custom_call.1} parent=1 // pred_fallthru
      _
    // Predicated region
    $region46: #{tpu_custom_call.1} parent=1 // pred_check
      _
    $region47: #{tpu_custom_call.1} parent=1 // pred_check_branch
      %96 = sbr.rel (0) target = $region49
    $region48: #{tpu_custom_call.1} parent=1 // pred_region
      %97 = dma.done [#allocation6], 256
    $region49: #{tpu_custom_call.1} parent=1 // pred_fallthru
      _
    // Predicated region
    $region50: #{tpu_custom_call.1} parent=1 // pred_check
      _
    $region51: #{tpu_custom_call.1} parent=1 // pred_check_branch
      %99 = sbr.rel (0) target = $region53
    $region52: #{tpu_custom_call.1} parent=1 // pred_region
      %100 = dma.done [#allocation9], 256
    $region53: #{tpu_custom_call.1} parent=1 // pred_fallthru
      _
    // Predicated region
    $region54: #{tpu_custom_call.1} parent=1 // pred_check
      _
    $region55: #{tpu_custom_call.1} parent=1 // pred_check_branch
      %102 = sbr.rel (0) target = $region57
    $region56: #{tpu_custom_call.1} parent=1 // pred_region
      %103 = dma.done [#allocation9], 256
    $region57: #{tpu_custom_call.1} parent=1 // pred_fallthru
      _
    %v105 = vld [vmem:[#allocation2] sm:$0xff]
    %v106 = vld [vmem:[#allocation2 + $0x8] sm:$0xff]
    %v107 = vpack.c.bf16 %v106, %v105
    %v108 = vld [vmem:[#allocation5] sm:$0xf]
    %v109 = vld [vmem:[#allocation5 + $0x4] sm:$0xf]
    %v110 = vld [vmem:[#allocation5 + $0x8] sm:$0xf]
    %v111 = vld [vmem:[#allocation5 + $0xc] sm:$0xf]
    %v116 = vunpack.c.l.b16 %v108
    %v117 = vunpack.c.l.b16 %v109
    %v118 = vunpack.c.l.b16 %v110
    %v119 = vunpack.c.l.b16 %v111
    %v120 = vpack.c.b16 %v117, %v116
    %v121 = vpack.c.b16 %v119, %v118
    %vm124 = vcmask 261120
    %v126 = vsel %vm124, %v107, 0
    %128 = vmatprep.subr.bf16.mxu0 0
    %129 = vmatpush1.bf16.msra.mxu0 %v120
    %130 = vmatprep.subr.bf16.mxu0 0
    %131 = vmatpush1.bf16.msra.mxu0 %v121
    %132 = vmatprep.subr.bf16.mxu0 0
    %133 = vmatpush1.bf16.msra.mxu0 0
    %134 = vmatprep.subr.bf16.mxu0 0
    %135 = vmatpush1.bf16.msra.mxu0 0
    %136 = vmatprep.subr.bf16.mxu0 0
    %137 = vmatpush1.bf16.msra.mxu0 0
    %138 = vmatprep.subr.bf16.mxu0 0
    %139 = vmatpush1.bf16.msra.mxu0 0
    %140 = vmatprep.subr.bf16.mxu0 0
    %141 = vmatpush1.bf16.msra.mxu0 0
    %142 = vmatprep.subr.bf16.mxu0 0
    %143 = vmatpush1.bf16.msra.mxu0 0
    %144 = vmatprep.subr.bf16.mxu0 0
    %145 = vmatpush1.bf16.msra.mxu0 0
    %146 = vmatprep.subr.bf16.mxu0 0
    %147 = vmatpush1.bf16.msra.mxu0 0
    %148 = vmatprep.subr.bf16.mxu0 0
    %149 = vmatpush1.bf16.msra.mxu0 0
    %150 = vmatprep.subr.bf16.mxu0 0
    %151 = vmatpush1.bf16.msra.mxu0 0
    %152 = vmatprep.subr.bf16.mxu0 0
    %153 = vmatpush1.bf16.msra.mxu0 0
    %154 = vmatprep.subr.bf16.mxu0 0
    %155 = vmatpush1.bf16.msra.mxu0 0
    %156 = vmatprep.subr.bf16.mxu0 0
    %157 = vmatpush1.bf16.msra.mxu0 0
    %158 = vmatprep.subr.bf16.mxu0 0
    %159 = vmatpush1.bf16.msra.mxu0 0
    %160 = vmatprep.mubr.bf16.mxu0 0
    %161 = vmatmul.mubr.bf16.gmra.mrb[0].mxu0 %v126
    %v162 = vpop.f32.mrb[0].mxu0
    %v163 = vadd.f32 0.0, %v162
    %v164 = vpop.f32.mrb[0].mxu0
    %v165 = vpop.f32.mrb[0].mxu0
    %v166 = vadd.f32 0.0, %v165
    %v167 = vpop.f32.mrb[0].mxu0
    %168 = vdwg.mxu0
    %v169 = vld [vmem:[%s5] sm:$0x1]
    %v170 = vld [vmem:[%s6] sm:$0x1]
    %v171 = vsel %vm124, %v163, 0.0
    %172 = vadd.xlane.f32.xlu0 %v171
    %v173 = vpop.xlane.xlu0 %172
    %v174 = vsel %vm124, %v166, 0.0
    %175 = vadd.xlane.f32.xlu0 %v174
    %v176 = vpop.xlane.xlu0 %175
    %v177 = vrcp.pop 32.0
    %v178 = vmul.f32 %v173, %v177
    %v179 = vmul.f32 %v176, %v177
    %v180 = vsub.f32 %v163, %v178
    %v181 = vsub.f32 %v166, %v179
    %v182 = vmul.f32 %v180, %v180
    %v183 = vmul.f32 %v181, %v181
    %v184 = vsel %vm124, %v182, 0.0
    %185 = vadd.xlane.f32.xlu0 %v184
    %v186 = vpop.xlane.xlu0 %185
    %v187 = vsel %vm124, %v183, 0.0
    %188 = vadd.xlane.f32.xlu0 %v187
    %v189 = vpop.xlane.xlu0 %188
    %v190 = vmul.f32 %v186, %v177
    %v191 = vmul.f32 %v189, %v177
    %v192 = vadd.f32 %v190, 1e-05
    %v193 = vadd.f32 %v191, 1e-05
    %v194 = vrsqrt.pop %v192
    %v195 = vrsqrt.pop %v193
    %v196 = vmul.f32 %v180, %v194
    %v197 = vmul.f32 %v181, %v195
    %v199 = vlaneseq
    %v200 = vshrl.u32 %v199, 7
    %v201 = vsub.s32 0, %v200
    %v202 = vrot.slane %v169, %v201
    %v204 = vmul.f32 %v196, %v202
    %v205 = vmul.f32 %v197, %v202
    %v207 = vlaneseq
    %v208 = vshrl.u32 %v207, 7
    %v209 = vsub.s32 0, %v208
    %v210 = vrot.slane %v170, %v209
    %v212 = vadd.f32 %v204, %v210
    %v213 = vadd.f32 %v205, %v210
    %v214 = vld [vmem:[#allocation7] sm:$0xf]
    %v215 = vld [vmem:[#allocation7 + $0x4] sm:$0xf]
    %v216 = vld [vmem:[#allocation7 + $0x8] sm:$0xf]
    %v217 = vld [vmem:[#allocation7 + $0xc] sm:$0xf]
    %v222 = vunpack.c.l.b16 %v214
    %v223 = vunpack.c.l.b16 %v215
    %v224 = vunpack.c.l.b16 %v216
    %v225 = vunpack.c.l.b16 %v217
    %v226 = vpack.c.b16 %v223, %v222
    %v227 = vpack.c.b16 %v225, %v224
    %230 = vmatprep.subr.bf16.mxu0 0
    %231 = vmatpush1.bf16.msra.mxu0 %v226
    %232 = vmatprep.subr.bf16.mxu0 0
    %233 = vmatpush1.bf16.msra.mxu0 %v227
    %234 = vmatprep.subr.bf16.mxu0 0
    %235 = vmatpush1.bf16.msra.mxu0 0
    %236 = vmatprep.subr.bf16.mxu0 0
    %237 = vmatpush1.bf16.msra.mxu0 0
    %238 = vmatprep.subr.bf16.mxu0 0
    %239 = vmatpush1.bf16.msra.mxu0 0
    %240 = vmatprep.subr.bf16.mxu0 0
    %241 = vmatpush1.bf16.msra.mxu0 0
    %242 = vmatprep.subr.bf16.mxu0 0
    %243 = vmatpush1.bf16.msra.mxu0 0
    %244 = vmatprep.subr.bf16.mxu0 0
    %245 = vmatpush1.bf16.msra.mxu0 0
    %246 = vmatprep.subr.bf16.mxu0 0
    %247 = vmatpush1.bf16.msra.mxu0 0
    %248 = vmatprep.subr.bf16.mxu0 0
    %249 = vmatpush1.bf16.msra.mxu0 0
    %250 = vmatprep.subr.bf16.mxu0 0
    %251 = vmatpush1.bf16.msra.mxu0 0
    %252 = vmatprep.subr.bf16.mxu0 0
    %253 = vmatpush1.bf16.msra.mxu0 0
    %254 = vmatprep.subr.bf16.mxu0 0
    %255 = vmatpush1.bf16.msra.mxu0 0
    %256 = vmatprep.subr.bf16.mxu0 0
    %257 = vmatpush1.bf16.msra.mxu0 0
    %258 = vmatprep.subr.bf16.mxu0 0
    %259 = vmatpush1.bf16.msra.mxu0 0
    %260 = vmatprep.subr.bf16.mxu0 0
    %261 = vmatpush1.bf16.msra.mxu0 0
    %262 = vmatprep.mubr.bf16.mxu0 0
    %263 = vmatmul.mubr.bf16.gmra.mrb[0].mxu0 %v126
    %v264 = vpop.f32.mrb[0].mxu0
    %v265 = vadd.f32 0.0, %v264
    %v266 = vpop.f32.mrb[0].mxu0
    %v267 = vpop.f32.mrb[0].mxu0
    %v268 = vadd.f32 0.0, %v267
    %v269 = vpop.f32.mrb[0].mxu0
    %270 = vdwg.mxu0
    %v271 = vld [vmem:[%s7] sm:$0x1]
    %v272 = vld [vmem:[%s8] sm:$0x1]
    %v273 = vsel %vm124, %v265, 0.0
    %274 = vadd.xlane.f32.xlu0 %v273
    %v275 = vpop.xlane.xlu0 %274
    %v276 = vsel %vm124, %v268, 0.0
    %277 = vadd.xlane.f32.xlu0 %v276
    %v278 = vpop.xlane.xlu0 %277
    %v279 = vmul.f32 %v275, %v177
    %v280 = vmul.f32 %v278, %v177
    %v281 = vsub.f32 %v265, %v279
    %v282 = vsub.f32 %v268, %v280
    %v283 = vmul.f32 %v281, %v281
    %v284 = vmul.f32 %v282, %v282
    %v285 = vsel %vm124, %v283, 0.0
    %286 = vadd.xlane.f32.xlu0 %v285
    %v287 = vpop.xlane.xlu0 %286
    %v288 = vsel %vm124, %v284, 0.0
    %289 = vadd.xlane.f32.xlu0 %v288
    %v290 = vpop.xlane.xlu0 %289
    %v291 = vmul.f32 %v287, %v177
    %v292 = vmul.f32 %v290, %v177
    %v293 = vadd.f32 %v291, 1e-05
    %v294 = vadd.f32 %v292, 1e-05
    %v295 = vrsqrt.pop %v293
    %v296 = vrsqrt.pop %v294
    %v297 = vmul.f32 %v281, %v295
    %v298 = vmul.f32 %v282, %v296
    %v300 = vlaneseq
    %v301 = vshrl.u32 %v300, 7
    %v302 = vsub.s32 0, %v301
    %v303 = vrot.slane %v271, %v302
    %v305 = vmul.f32 %v297, %v303
    %v306 = vmul.f32 %v298, %v303
    %v308 = vlaneseq
    %v309 = vshrl.u32 %v308, 7
    %v310 = vsub.s32 0, %v309
    %v311 = vrot.slane %v272, %v310
    %v313 = vadd.f32 %v305, %v311
    %v314 = vadd.f32 %v306, %v311
    %v315 = vld [vmem:[#allocation8] sm:$0xf]
    %v316 = vld [vmem:[#allocation8 + $0x4] sm:$0xf]
    %v317 = vld [vmem:[#allocation8 + $0x8] sm:$0xf]
    %v318 = vld [vmem:[#allocation8 + $0xc] sm:$0xf]
    %v323 = vunpack.c.l.b16 %v315
    %v324 = vunpack.c.l.b16 %v316
    %v325 = vunpack.c.l.b16 %v317
    %v326 = vunpack.c.l.b16 %v318
    %v327 = vpack.c.b16 %v324, %v323
    %v328 = vpack.c.b16 %v326, %v325
    %331 = vmatprep.subr.bf16.mxu0 0
    %332 = vmatpush1.bf16.msra.mxu0 %v327
    %333 = vmatprep.subr.bf16.mxu0 0
    %334 = vmatpush1.bf16.msra.mxu0 %v328
    %335 = vmatprep.subr.bf16.mxu0 0
    %336 = vmatpush1.bf16.msra.mxu0 0
    %337 = vmatprep.subr.bf16.mxu0 0
    %338 = vmatpush1.bf16.msra.mxu0 0
    %339 = vmatprep.subr.bf16.mxu0 0
    %340 = vmatpush1.bf16.msra.mxu0 0
    %341 = vmatprep.subr.bf16.mxu0 0
    %342 = vmatpush1.bf16.msra.mxu0 0
    %343 = vmatprep.subr.bf16.mxu0 0
    %344 = vmatpush1.bf16.msra.mxu0 0
    %345 = vmatprep.subr.bf16.mxu0 0
    %346 = vmatpush1.bf16.msra.mxu0 0
    %347 = vmatprep.subr.bf16.mxu0 0
    %348 = vmatpush1.bf16.msra.mxu0 0
    %349 = vmatprep.subr.bf16.mxu0 0
    %350 = vmatpush1.bf16.msra.mxu0 0
    %351 = vmatprep.subr.bf16.mxu0 0
    %352 = vmatpush1.bf16.msra.mxu0 0
    %353 = vmatprep.subr.bf16.mxu0 0
    %354 = vmatpush1.bf16.msra.mxu0 0
    %355 = vmatprep.subr.bf16.mxu0 0
    %356 = vmatpush1.bf16.msra.mxu0 0
    %357 = vmatprep.subr.bf16.mxu0 0
    %358 = vmatpush1.bf16.msra.mxu0 0
    %359 = vmatprep.subr.bf16.mxu0 0
    %360 = vmatpush1.bf16.msra.mxu0 0
    %361 = vmatprep.subr.bf16.mxu0 0
    %362 = vmatpush1.bf16.msra.mxu0 0
    %363 = vmatprep.mubr.bf16.mxu0 0
    %364 = vmatmul.mubr.bf16.gmra.mrb[0].mxu0 %v126
    %v365 = vpop.f32.mrb[0].mxu0
    %v366 = vadd.f32 0.0, %v365
    %v367 = vpop.f32.mrb[0].mxu0
    %v368 = vpop.f32.mrb[0].mxu0
    %v369 = vadd.f32 0.0, %v368
    %v370 = vpop.f32.mrb[0].mxu0
    %371 = vdwg.mxu0
    %v372 = vmul.f32 %v212, 0.35355338
    %v373 = vmul.f32 %v213, 0.35355338
    %v374 = vpack.c.bf16 %v373, %v372
    %v375 = vpack.c.bf16 %v314, %v313
    %v376 = vpack.c.bf16 %v369, %v366
    %v377 = vlaneseq
    %v378 = vshrl.u32 %v377, 7
    %v379 = vlaneseq
    %v380 = vand.u32 %v379, 127
    %vm381 = vcmp.le.s32.totalorder %v380, %v378
    %vm382 = vcmask 64512
    %v384 = vsel %vm382, %v374, 0
    %v387 = vsel %vm382, %v375, 0
    %389 = vmatprep.subr.bf16.mxu0 0
    %390 = vmatpush1.bf16.xpose.msra.mxu0 %v387
    %391 = vmatprep.subr.bf16.mxu0 0
    %392 = vmatpush1.bf16.xpose.msra.mxu0 0
    %393 = vmatprep.subr.bf16.mxu0 0
    %394 = vmatpush1.bf16.xpose.msra.mxu0 0
    %395 = vmatprep.subr.bf16.mxu0 0
    %396 = vmatpush1.bf16.xpose.msra.mxu0 0
    %397 = vmatprep.subr.bf16.mxu0 0
    %398 = vmatpush1.bf16.xpose.msra.mxu0 0
    %399 = vmatprep.subr.bf16.mxu0 0
    %400 = vmatpush1.bf16.xpose.msra.mxu0 0
    %401 = vmatprep.subr.bf16.mxu0 0
    %402 = vmatpush1.bf16.xpose.msra.mxu0 0
    %403 = vmatprep.subr.bf16.mxu0 0
    %404 = vmatpush1.bf16.xpose.msra.mxu0 0
    %405 = vmatprep.subr.bf16.mxu0 0
    %406 = vmatpush1.bf16.xpose.msra.mxu0 0
    %407 = vmatprep.subr.bf16.mxu0 0
    %408 = vmatpush1.bf16.xpose.msra.mxu0 0
    %409 = vmatprep.subr.bf16.mxu0 0
    %410 = vmatpush1.bf16.xpose.msra.mxu0 0
    %411 = vmatprep.subr.bf16.mxu0 0
    %412 = vmatpush1.bf16.xpose.msra.mxu0 0
    %413 = vmatprep.subr.bf16.mxu0 0
    %414 = vmatpush1.bf16.xpose.msra.mxu0 0
    %415 = vmatprep.subr.bf16.mxu0 0
    %416 = vmatpush1.bf16.xpose.msra.mxu0 0
    %417 = vmatprep.subr.bf16.mxu0 0
    %418 = vmatpush1.bf16.xpose.msra.mxu0 0
    %419 = vmatprep.subr.bf16.mxu0 0
    %420 = vmatpush1.bf16.xpose.msra.mxu0 0
    %421 = vmatprep.mubr.bf16.mxu0 0
    %422 = vmatmul.mubr.bf16.gmra.mrb[0].mxu0 %v384
    %v423 = vpop.f32.mrb[0].mxu0
    %v424 = vadd.f32 0.0, %v423
    %v425 = vpop.f32.mrb[0].mxu0
    %v426 = vpop.f32.mrb[0].mxu0
    %v427 = vpop.f32.mrb[0].mxu0
    %428 = vdwg.mxu0
    %v429 = vsel %vm381, %v424, -inf
    %v430 = vmax.f32 %v429, 0.0
    %vm431 = vcmp.eq.s32.totalorder %v380, 0
    %vm432 = vcmp.eq.s32.totalorder %v380, %v378
    %vm433 = vmor %vm431, %vm432
    %v434 = vsel %vm433, 0.0, %v430
    %vm435 = vcmp.lt.s32.totalorder %v380, %v378
    %v436 = vsel %vm435, 1, 0
    %v437 = vcvt.s32.f32 %v436
    %v439 = vsel %vm382, %v437, 0
    %441 = vmatprep.subr.mxu0 0.0
    %442 = vmatpush1.msra.mxu0 %v434
    %443 = vmatprep.subr.mxu0 0.0
    %444 = vmatpush1.msra.mxu0 0.0
    %445 = vmatprep.subr.mxu0 0.0
    %446 = vmatpush1.msra.mxu0 0.0
    %447 = vmatprep.subr.mxu0 0.0
    %448 = vmatpush1.msra.mxu0 0.0
    %449 = vmatprep.subr.mxu0 0.0
    %450 = vmatpush1.msra.mxu0 0.0
    %451 = vmatprep.subr.mxu0 0.0
    %452 = vmatpush1.msra.mxu0 0.0
    %453 = vmatprep.subr.mxu0 0.0
    %454 = vmatpush1.msra.mxu0 0.0
    %455 = vmatprep.subr.mxu0 0.0
    %456 = vmatpush1.msra.mxu0 0.0
    %457 = vmatprep.subr.mxu0 0.0
    %458 = vmatpush1.msra.mxu0 0.0
    %459 = vmatprep.subr.mxu0 0.0
    %460 = vmatpush1.msra.mxu0 0.0
    %461 = vmatprep.subr.mxu0 0.0
    %462 = vmatpush1.msra.mxu0 0.0
    %463 = vmatprep.subr.mxu0 0.0
    %464 = vmatpush1.msra.mxu0 0.0
    %465 = vmatprep.subr.mxu0 0.0
    %466 = vmatpush1.msra.mxu0 0.0
    %467 = vmatprep.subr.mxu0 0.0
    %468 = vmatpush1.msra.mxu0 0.0
    %469 = vmatprep.subr.mxu0 0.0
    %470 = vmatpush1.msra.mxu0 0.0
    %471 = vmatprep.subr.mxu0 0.0
    %472 = vmatpush1.msra.mxu0 0.0
    %473 = vmatprep.subr.mxu0 0.0
    %474 = vmatpush1.msra.mxu0 0.0
    %475 = vmatprep.subr.mxu0 0.0
    %476 = vmatpush1.msra.mxu0 0.0
    %477 = vmatprep.subr.mxu0 0.0
    %478 = vmatpush1.msra.mxu0 0.0
    %479 = vmatprep.subr.mxu0 0.0
    %480 = vmatpush1.msra.mxu0 0.0
    %481 = vmatprep.subr.mxu0 0.0
    %482 = vmatpush1.msra.mxu0 0.0
    %483 = vmatprep.subr.mxu0 0.0
    %484 = vmatpush1.msra.mxu0 0.0
    %485 = vmatprep.subr.mxu0 0.0
    %486 = vmatpush1.msra.mxu0 0.0
    %487 = vmatprep.subr.mxu0 0.0
    %488 = vmatpush1.msra.mxu0 0.0
    %489 = vmatprep.subr.mxu0 0.0
    %490 = vmatpush1.msra.mxu0 0.0
    %491 = vmatprep.subr.mxu0 0.0
    %492 = vmatpush1.msra.mxu0 0.0
    %493 = vmatprep.subr.mxu0 0.0
    %494 = vmatpush1.msra.mxu0 0.0
    %495 = vmatprep.subr.mxu0 0.0
    %496 = vmatpush1.msra.mxu0 0.0
    %497 = vmatprep.subr.mxu0 0.0
    %498 = vmatpush1.msra.mxu0 0.0
    %499 = vmatprep.subr.mxu0 0.0
    %500 = vmatpush1.msra.mxu0 0.0
    %501 = vmatprep.subr.mxu0 0.0
    %502 = vmatpush1.msra.mxu0 0.0
    %503 = vmatprep.subr.mxu0 0.0
    %504 = vmatpush1.msra.mxu0 0.0
    %505 = vmatprep.mubr.f32.mxu0 0.0
    %506 = vmatmul.mubr.f32.gmra.mrb[0].mxu0 %v439
    %v507 = vpop.f32.mrb[0].mxu0
    %v508 = vadd.f32 0.0, %v507
    %v509 = vpop.f32.mrb[0].mxu0
    %510 = vdwg.mxu0
    %v511 = vsub.f32 %v429, %v508
    %v512 = vsel %vm382, %v511, -inf
    %513 = vmax.xlane.f32.xlu0 %v512
    %v514 = vpop.xlane.xlu0 %513
    %v515 = vsub.f32 %v511, %v514
    %v516 = vmul.f32 %v515, 1.442695
    %v517 = vpow.pop %v516
    %v518 = vsel %vm382, %v517, 0.0
    %519 = vadd.xlane.f32.xlu0 %v518
    %v520 = vpop.xlane.xlu0 %519
    %v521 = vrcp.pop %v520
    %v522 = vmul.f32 %v517, %v521
    %v523 = vpack.c.bf16 %v522, %v522
    %v525 = vsel %vm382, %v523, 0
    %vm527 = vcmask 1043456
    %v529 = vsel %vm527, %v376, 0
    %531 = vmatprep.subr.bf16.mxu0 0
    %532 = vmatpush1.bf16.msra.mxu0 %v529
    %533 = vmatprep.subr.bf16.mxu0 0
    %534 = vmatpush1.bf16.msra.mxu0 0
    %535 = vmatprep.subr.bf16.mxu0 0
    %536 = vmatpush1.bf16.msra.mxu0 0
    %537 = vmatprep.subr.bf16.mxu0 0
    %538 = vmatpush1.bf16.msra.mxu0 0
    %539 = vmatprep.subr.bf16.mxu0 0
    %540 = vmatpush1.bf16.msra.mxu0 0
    %541 = vmatprep.subr.bf16.mxu0 0
    %542 = vmatpush1.bf16.msra.mxu0 0
    %543 = vmatprep.subr.bf16.mxu0 0
    %544 = vmatpush1.bf16.msra.mxu0 0
    %545 = vmatprep.subr.bf16.mxu0 0
    %546 = vmatpush1.bf16.msra.mxu0 0
    %547 = vmatprep.subr.bf16.mxu0 0
    %548 = vmatpush1.bf16.msra.mxu0 0
    %549 = vmatprep.subr.bf16.mxu0 0
    %550 = vmatpush1.bf16.msra.mxu0 0
    %551 = vmatprep.subr.bf16.mxu0 0
    %552 = vmatpush1.bf16.msra.mxu0 0
    %553 = vmatprep.subr.bf16.mxu0 0
    %554 = vmatpush1.bf16.msra.mxu0 0
    %555 = vmatprep.subr.bf16.mxu0 0
    %556 = vmatpush1.bf16.msra.mxu0 0
    %557 = vmatprep.subr.bf16.mxu0 0
    %558 = vmatpush1.bf16.msra.mxu0 0
    %559 = vmatprep.subr.bf16.mxu0 0
    %560 = vmatpush1.bf16.msra.mxu0 0
    %561 = vmatprep.subr.bf16.mxu0 0
    %562 = vmatpush1.bf16.msra.mxu0 0
    %563 = vmatprep.mubr.bf16.mxu0 0
    %564 = vmatmul.mubr.bf16.gmra.mrb[0].mxu0 %v525
    %v565 = vpop.f32.mrb[0].mxu0
    %v566 = vadd.f32 0.0, %v565
    %v567 = vpop.f32.mrb[0].mxu0
    %v568 = vpop.f32.mrb[0].mxu0
    %v569 = vpop.f32.mrb[0].mxu0
    %570 = vdwg.mxu0
    %v571 = vpack.c.bf16 %v566, %v566
    %v572 = vld [vmem:[#allocation10] sm:$0xf]
    %574 = vrot.lane.b32.xlu0 %v374, 120
    %v575 = vpop.permute.xlu0 %574
    %577 = vrot.lane.b32.xlu0 %v375, 120
    %v578 = vpop.permute.xlu0 %577
    %v580 = vsel %vm382, %v575, 0
    %v583 = vsel %vm382, %v578, 0
    %585 = vmatprep.subr.bf16.mxu0 0
    %586 = vmatpush1.bf16.xpose.msra.mxu0 %v583
    %587 = vmatprep.subr.bf16.mxu0 0
    %588 = vmatpush1.bf16.xpose.msra.mxu0 0
    %589 = vmatprep.subr.bf16.mxu0 0
    %590 = vmatpush1.bf16.xpose.msra.mxu0 0
    %591 = vmatprep.subr.bf16.mxu0 0
    %592 = vmatpush1.bf16.xpose.msra.mxu0 0
    %593 = vmatprep.subr.bf16.mxu0 0
    %594 = vmatpush1.bf16.xpose.msra.mxu0 0
    %595 = vmatprep.subr.bf16.mxu0 0
    %596 = vmatpush1.bf16.xpose.msra.mxu0 0
    %597 = vmatprep.subr.bf16.mxu0 0
    %598 = vmatpush1.bf16.xpose.msra.mxu0 0
    %599 = vmatprep.subr.bf16.mxu0 0
    %600 = vmatpush1.bf16.xpose.msra.mxu0 0
    %601 = vmatprep.subr.bf16.mxu0 0
    %602 = vmatpush1.bf16.xpose.msra.mxu0 0
    %603 = vmatprep.subr.bf16.mxu0 0
    %604 = vmatpush1.bf16.xpose.msra.mxu0 0
    %605 = vmatprep.subr.bf16.mxu0 0
    %606 = vmatpush1.bf16.xpose.msra.mxu0 0
    %607 = vmatprep.subr.bf16.mxu0 0
    %608 = vmatpush1.bf16.xpose.msra.mxu0 0
    %609 = vmatprep.subr.bf16.mxu0 0
    %610 = vmatpush1.bf16.xpose.msra.mxu0 0
    %611 = vmatprep.subr.bf16.mxu0 0
    %612 = vmatpush1.bf16.xpose.msra.mxu0 0
    %613 = vmatprep.subr.bf16.mxu0 0
    %614 = vmatpush1.bf16.xpose.msra.mxu0 0
    %615 = vmatprep.subr.bf16.mxu0 0
    %616 = vmatpush1.bf16.xpose.msra.mxu0 0
    %617 = vmatprep.mubr.bf16.mxu0 0
    %618 = vmatmul.mubr.bf16.gmra.mrb[0].mxu0 %v580
    %v619 = vpop.f32.mrb[0].mxu0
    %v620 = vadd.f32 0.0, %v619
    %v621 = vpop.f32.mrb[0].mxu0
    %v622 = vpop.f32.mrb[0].mxu0
    %v623 = vpop.f32.mrb[0].mxu0
    %624 = vdwg.mxu0
    %v625 = vsel %vm381, %v620, -inf
    %v626 = vsub.f32 %v625, %v508
    %v627 = vsel %vm382, %v626, -inf
    %628 = vmax.xlane.f32.xlu0 %v627
    %v629 = vpop.xlane.xlu0 %628
    %v630 = vsub.f32 %v626, %v629
    %v631 = vmul.f32 %v630, 1.442695
    %v632 = vpow.pop %v631
    %v633 = vsel %vm382, %v632, 0.0
    %634 = vadd.xlane.f32.xlu0 %v633
    %v635 = vpop.xlane.xlu0 %634
    %v636 = vrcp.pop %v635
    %v637 = vmul.f32 %v632, %v636
    %v638 = vpack.c.bf16 %v637, %v637
    %640 = vrot.lane.b32.xlu0 %v376, 120
    %v641 = vpop.permute.xlu0 %640
    %v643 = vsel %vm382, %v638, 0
    %v646 = vsel %vm527, %v641, 0
    %648 = vmatprep.subr.bf16.mxu0 0
    %649 = vmatpush1.bf16.msra.mxu0 %v646
    %650 = vmatprep.subr.bf16.mxu0 0
    %651 = vmatpush1.bf16.msra.mxu0 0
    %652 = vmatprep.subr.bf16.mxu0 0
    %653 = vmatpush1.bf16.msra.mxu0 0
    %654 = vmatprep.subr.bf16.mxu0 0
    %655 = vmatpush1.bf16.msra.mxu0 0
    %656 = vmatprep.subr.bf16.mxu0 0
    %657 = vmatpush1.bf16.msra.mxu0 0
    %658 = vmatprep.subr.bf16.mxu0 0
    %659 = vmatpush1.bf16.msra.mxu0 0
    %660 = vmatprep.subr.bf16.mxu0 0
    %661 = vmatpush1.bf16.msra.mxu0 0
    %662 = vmatprep.subr.bf16.mxu0 0
    %663 = vmatpush1.bf16.msra.mxu0 0
    %664 = vmatprep.subr.bf16.mxu0 0
    %665 = vmatpush1.bf16.msra.mxu0 0
    %666 = vmatprep.subr.bf16.mxu0 0
    %667 = vmatpush1.bf16.msra.mxu0 0
    %668 = vmatprep.subr.bf16.mxu0 0
    %669 = vmatpush1.bf16.msra.mxu0 0
    %670 = vmatprep.subr.bf16.mxu0 0
    %671 = vmatpush1.bf16.msra.mxu0 0
    %672 = vmatprep.subr.bf16.mxu0 0
    %673 = vmatpush1.bf16.msra.mxu0 0
    %674 = vmatprep.subr.bf16.mxu0 0
    %675 = vmatpush1.bf16.msra.mxu0 0
    %676 = vmatprep.subr.bf16.mxu0 0
    %677 = vmatpush1.bf16.msra.mxu0 0
    %678 = vmatprep.subr.bf16.mxu0 0
    %679 = vmatpush1.bf16.msra.mxu0 0
    %680 = vmatprep.mubr.bf16.mxu0 0
    %681 = vmatmul.mubr.bf16.gmra.mrb[0].mxu0 %v643
    %v682 = vpop.f32.mrb[0].mxu0
    %v683 = vadd.f32 0.0, %v682
    %v684 = vpop.f32.mrb[0].mxu0
    %v685 = vpop.f32.mrb[0].mxu0
    %v686 = vpop.f32.mrb[0].mxu0
    %687 = vdwg.mxu0
    %v688 = vpack.c.bf16 %v683, %v683
    %s689 = scalar_lea.vmem [#allocation10], 4
    %v690 = vld [vmem:[%s689] sm:$0xf]
    %v692 = vsel %vm382, %v688, 0
    %v695 = vsel %vm527, %v690, 0
    %697 = vmatprep.subr.bf16.mxu0 0
    %698 = vmatpush1.bf16.msra.mxu0 %v695
    %699 = vmatprep.subr.bf16.mxu0 0
    %700 = vmatpush1.bf16.msra.mxu0 0
    %701 = vmatprep.subr.bf16.mxu0 0
    %702 = vmatpush1.bf16.msra.mxu0 0
    %703 = vmatprep.subr.bf16.mxu0 0
    %704 = vmatpush1.bf16.msra.mxu0 0
    %705 = vmatprep.subr.bf16.mxu0 0
    %706 = vmatpush1.bf16.msra.mxu0 0
    %707 = vmatprep.subr.bf16.mxu0 0
    %708 = vmatpush1.bf16.msra.mxu0 0
    %709 = vmatprep.subr.bf16.mxu0 0
    %710 = vmatpush1.bf16.msra.mxu0 0
    %711 = vmatprep.subr.bf16.mxu0 0
    %712 = vmatpush1.bf16.msra.mxu0 0
    %713 = vmatprep.subr.bf16.mxu0 0
    %714 = vmatpush1.bf16.msra.mxu0 0
    %715 = vmatprep.subr.bf16.mxu0 0
    %716 = vmatpush1.bf16.msra.mxu0 0
    %717 = vmatprep.subr.bf16.mxu0 0
    %718 = vmatpush1.bf16.msra.mxu0 0
    %719 = vmatprep.subr.bf16.mxu0 0
    %720 = vmatpush1.bf16.msra.mxu0 0
    %721 = vmatprep.subr.bf16.mxu0 0
    %722 = vmatpush1.bf16.msra.mxu0 0
    %723 = vmatprep.subr.bf16.mxu0 0
    %724 = vmatpush1.bf16.msra.mxu0 0
    %725 = vmatprep.subr.bf16.mxu0 0
    %726 = vmatpush1.bf16.msra.mxu0 0
    %727 = vmatprep.subr.bf16.mxu0 0
    %728 = vmatpush1.bf16.msra.mxu0 0
    %729 = vmatprep.mubr.bf16.mxu0 0
    %730 = vmatmul.mubr.bf16.gmra.mrb[0].mxu0 %v692
    %v731 = vpop.f32.mrb[0].mxu0
    %v732 = vadd.f32 0.0, %v731
    %v733 = vpop.f32.mrb[0].mxu0
    %v734 = vpop.f32.mrb[0].mxu0
    %v735 = vpop.f32.mrb[0].mxu0
    %736 = vdwg.mxu0
    %v738 = vsel %vm382, %v571, 0
    %v741 = vsel %vm527, %v572, 0
    %743 = vmatprep.subr.bf16.mxu0 0
    %744 = vmatpush1.bf16.msra.mxu0 %v741
    %745 = vmatprep.subr.bf16.mxu0 0
    %746 = vmatpush1.bf16.msra.mxu0 0
    %747 = vmatprep.subr.bf16.mxu0 0
    %748 = vmatpush1.bf16.msra.mxu0 0
    %749 = vmatprep.subr.bf16.mxu0 0
    %750 = vmatpush1.bf16.msra.mxu0 0
    %751 = vmatprep.subr.bf16.mxu0 0
    %752 = vmatpush1.bf16.msra.mxu0 0
    %753 = vmatprep.subr.bf16.mxu0 0
    %754 = vmatpush1.bf16.msra.mxu0 0
    %755 = vmatprep.subr.bf16.mxu0 0
    %756 = vmatpush1.bf16.msra.mxu0 0
    %757 = vmatprep.subr.bf16.mxu0 0
    %758 = vmatpush1.bf16.msra.mxu0 0
    %759 = vmatprep.subr.bf16.mxu0 0
    %760 = vmatpush1.bf16.msra.mxu0 0
    %761 = vmatprep.subr.bf16.mxu0 0
    %762 = vmatpush1.bf16.msra.mxu0 0
    %763 = vmatprep.subr.bf16.mxu0 0
    %764 = vmatpush1.bf16.msra.mxu0 0
    %765 = vmatprep.subr.bf16.mxu0 0
    %766 = vmatpush1.bf16.msra.mxu0 0
    %767 = vmatprep.subr.bf16.mxu0 0
    %768 = vmatpush1.bf16.msra.mxu0 0
    %769 = vmatprep.subr.bf16.mxu0 0
    %770 = vmatpush1.bf16.msra.mxu0 0
    %771 = vmatprep.subr.bf16.mxu0 0
    %772 = vmatpush1.bf16.msra.mxu0 0
    %773 = vmatprep.subr.bf16.mxu0 0
    %774 = vmatpush1.bf16.msra.mxu0 0
    %775 = vmatprep.mubr.bf16.mxu0 0
    %776 = vmatmul.mubr.bf16.gmra.mrb[0].mxu0 %v738
    %v777 = vpop.f32.mrb[0].mxu0
    %v778 = vadd.f32 %v732, %v777
    %v779 = vpop.f32.mrb[0].mxu0
    %v780 = vpop.f32.mrb[0].mxu0
    %v781 = vpop.f32.mrb[0].mxu0
    %782 = vdwg.mxu0
    %783 = vrot.lane.b32.xlu0 %v374, 112
    %v784 = vpop.permute.xlu0 %783
    %785 = vrot.lane.b32.xlu0 %v375, 112
    %v786 = vpop.permute.xlu0 %785
    %v788 = vsel %vm382, %v784, 0
    %v791 = vsel %vm382, %v786, 0
    %793 = vmatprep.subr.bf16.mxu0 0
    %794 = vmatpush1.bf16.xpose.msra.mxu0 %v791
    %795 = vmatprep.subr.bf16.mxu0 0
    %796 = vmatpush1.bf16.xpose.msra.mxu0 0
    %797 = vmatprep.subr.bf16.mxu0 0
    %798 = vmatpush1.bf16.xpose.msra.mxu0 0
    %799 = vmatprep.subr.bf16.mxu0 0
    %800 = vmatpush1.bf16.xpose.msra.mxu0 0
    %801 = vmatprep.subr.bf16.mxu0 0
    %802 = vmatpush1.bf16.xpose.msra.mxu0 0
    %803 = vmatprep.subr.bf16.mxu0 0
    %804 = vmatpush1.bf16.xpose.msra.mxu0 0
    %805 = vmatprep.subr.bf16.mxu0 0
    %806 = vmatpush1.bf16.xpose.msra.mxu0 0
    %807 = vmatprep.subr.bf16.mxu0 0
    %808 = vmatpush1.bf16.xpose.msra.mxu0 0
    %809 = vmatprep.subr.bf16.mxu0 0
    %810 = vmatpush1.bf16.xpose.msra.mxu0 0
    %811 = vmatprep.subr.bf16.mxu0 0
    %812 = vmatpush1.bf16.xpose.msra.mxu0 0
    %813 = vmatprep.subr.bf16.mxu0 0
    %814 = vmatpush1.bf16.xpose.msra.mxu0 0
    %815 = vmatprep.subr.bf16.mxu0 0
    %816 = vmatpush1.bf16.xpose.msra.mxu0 0
    %817 = vmatprep.subr.bf16.mxu0 0
    %818 = vmatpush1.bf16.xpose.msra.mxu0 0
    %819 = vmatprep.subr.bf16.mxu0 0
    %820 = vmatpush1.bf16.xpose.msra.mxu0 0
    %821 = vmatprep.subr.bf16.mxu0 0
    %822 = vmatpush1.bf16.xpose.msra.mxu0 0
    %823 = vmatprep.subr.bf16.mxu0 0
    %824 = vmatpush1.bf16.xpose.msra.mxu0 0
    %825 = vmatprep.mubr.bf16.mxu0 0
    %826 = vmatmul.mubr.bf16.gmra.mrb[0].mxu0 %v788
    %v827 = vpop.f32.mrb[0].mxu0
    %v828 = vadd.f32 0.0, %v827
    %v829 = vpop.f32.mrb[0].mxu0
    %v830 = vpop.f32.mrb[0].mxu0
    %v831 = vpop.f32.mrb[0].mxu0
    %832 = vdwg.mxu0
    %v833 = vsel %vm381, %v828, -inf
    %v834 = vsub.f32 %v833, %v508
    %v835 = vsel %vm382, %v834, -inf
    %836 = vmax.xlane.f32.xlu0 %v835
    %v837 = vpop.xlane.xlu0 %836
    %v838 = vsub.f32 %v834, %v837
    %v839 = vmul.f32 %v838, 1.442695
    %v840 = vpow.pop %v839
    %v841 = vsel %vm382, %v840, 0.0
    %842 = vadd.xlane.f32.xlu0 %v841
    %v843 = vpop.xlane.xlu0 %842
    %v844 = vrcp.pop %v843
    %v845 = vmul.f32 %v840, %v844
    %v846 = vpack.c.bf16 %v845, %v845
    %847 = vrot.lane.b32.xlu0 %v376, 112
    %v848 = vpop.permute.xlu0 %847
    %v850 = vsel %vm382, %v846, 0
    %v853 = vsel %vm527, %v848, 0
    %855 = vmatprep.subr.bf16.mxu0 0
    %856 = vmatpush1.bf16.msra.mxu0 %v853
    %857 = vmatprep.subr.bf16.mxu0 0
    %858 = vmatpush1.bf16.msra.mxu0 0
    %859 = vmatprep.subr.bf16.mxu0 0
    %860 = vmatpush1.bf16.msra.mxu0 0
    %861 = vmatprep.subr.bf16.mxu0 0
    %862 = vmatpush1.bf16.msra.mxu0 0
    %863 = vmatprep.subr.bf16.mxu0 0
    %864 = vmatpush1.bf16.msra.mxu0 0
    %865 = vmatprep.subr.bf16.mxu0 0
    %866 = vmatpush1.bf16.msra.mxu0 0
    %867 = vmatprep.subr.bf16.mxu0 0
    %868 = vmatpush1.bf16.msra.mxu0 0
    %869 = vmatprep.subr.bf16.mxu0 0
    %870 = vmatpush1.bf16.msra.mxu0 0
    %871 = vmatprep.subr.bf16.mxu0 0
    %872 = vmatpush1.bf16.msra.mxu0 0
    %873 = vmatprep.subr.bf16.mxu0 0
    %874 = vmatpush1.bf16.msra.mxu0 0
    %875 = vmatprep.subr.bf16.mxu0 0
    %876 = vmatpush1.bf16.msra.mxu0 0
    %877 = vmatprep.subr.bf16.mxu0 0
    %878 = vmatpush1.bf16.msra.mxu0 0
    %879 = vmatprep.subr.bf16.mxu0 0
    %880 = vmatpush1.bf16.msra.mxu0 0
    %881 = vmatprep.subr.bf16.mxu0 0
    %882 = vmatpush1.bf16.msra.mxu0 0
    %883 = vmatprep.subr.bf16.mxu0 0
    %884 = vmatpush1.bf16.msra.mxu0 0
    %885 = vmatprep.subr.bf16.mxu0 0
    %886 = vmatpush1.bf16.msra.mxu0 0
    %887 = vmatprep.mubr.bf16.mxu0 0
    %888 = vmatmul.mubr.bf16.gmra.mrb[0].mxu0 %v850
    %v889 = vpop.f32.mrb[0].mxu0
    %v890 = vadd.f32 0.0, %v889
    %v891 = vpop.f32.mrb[0].mxu0
    %v892 = vpop.f32.mrb[0].mxu0
    %v893 = vpop.f32.mrb[0].mxu0
    %894 = vdwg.mxu0
    %v895 = vpack.c.bf16 %v890, %v890
    %s896 = scalar_lea.vmem [#allocation10], 8
    %v897 = vld [vmem:[%s896] sm:$0xf]
    %v899 = vsel %vm382, %v895, 0
    %v902 = vsel %vm527, %v897, 0
    %904 = vmatprep.subr.bf16.mxu0 0
    %905 = vmatpush1.bf16.msra.mxu0 %v902
    %906 = vmatprep.subr.bf16.mxu0 0
    %907 = vmatpush1.bf16.msra.mxu0 0
    %908 = vmatprep.subr.bf16.mxu0 0
    %909 = vmatpush1.bf16.msra.mxu0 0
    %910 = vmatprep.subr.bf16.mxu0 0
    %911 = vmatpush1.bf16.msra.mxu0 0
    %912 = vmatprep.subr.bf16.mxu0 0
    %913 = vmatpush1.bf16.msra.mxu0 0
    %914 = vmatprep.subr.bf16.mxu0 0
    %915 = vmatpush1.bf16.msra.mxu0 0
    %916 = vmatprep.subr.bf16.mxu0 0
    %917 = vmatpush1.bf16.msra.mxu0 0
    %918 = vmatprep.subr.bf16.mxu0 0
    %919 = vmatpush1.bf16.msra.mxu0 0
    %920 = vmatprep.subr.bf16.mxu0 0
    %921 = vmatpush1.bf16.msra.mxu0 0
    %922 = vmatprep.subr.bf16.mxu0 0
    %923 = vmatpush1.bf16.msra.mxu0 0
    %924 = vmatprep.subr.bf16.mxu0 0
    %925 = vmatpush1.bf16.msra.mxu0 0
    %926 = vmatprep.subr.bf16.mxu0 0
    %927 = vmatpush1.bf16.msra.mxu0 0
    %928 = vmatprep.subr.bf16.mxu0 0
    %929 = vmatpush1.bf16.msra.mxu0 0
    %930 = vmatprep.subr.bf16.mxu0 0
    %931 = vmatpush1.bf16.msra.mxu0 0
    %932 = vmatprep.subr.bf16.mxu0 0
    %933 = vmatpush1.bf16.msra.mxu0 0
    %934 = vmatprep.subr.bf16.mxu0 0
    %935 = vmatpush1.bf16.msra.mxu0 0
    %936 = vmatprep.mubr.bf16.mxu0 0
    %937 = vmatmul.mubr.bf16.gmra.mrb[0].mxu0 %v899
    %v938 = vpop.f32.mrb[0].mxu0
    %v939 = vadd.f32 0.0, %v938
    %v940 = vpop.f32.mrb[0].mxu0
    %v941 = vpop.f32.mrb[0].mxu0
    %v942 = vpop.f32.mrb[0].mxu0
    %943 = vdwg.mxu0
    %v944 = vadd.f32 %v778, %v939
    %945 = vrot.lane.b32.xlu0 %v374, 104
    %v946 = vpop.permute.xlu0 %945
    %947 = vrot.lane.b32.xlu0 %v375, 104
    %v948 = vpop.permute.xlu0 %947
    %v950 = vsel %vm382, %v946, 0
    %v953 = vsel %vm382, %v948, 0
    %955 = vmatprep.subr.bf16.mxu0 0
    %956 = vmatpush1.bf16.xpose.msra.mxu0 %v953
    %957 = vmatprep.subr.bf16.mxu0 0
    %958 = vmatpush1.bf16.xpose.msra.mxu0 0
    %959 = vmatprep.subr.bf16.mxu0 0
    %960 = vmatpush1.bf16.xpose.msra.mxu0 0
    %961 = vmatprep.subr.bf16.mxu0 0
    %962 = vmatpush1.bf16.xpose.msra.mxu0 0
    %963 = vmatprep.subr.bf16.mxu0 0
    %964 = vmatpush1.bf16.xpose.msra.mxu0 0
    %965 = vmatprep.subr.bf16.mxu0 0
    %966 = vmatpush1.bf16.xpose.msra.mxu0 0
    %967 = vmatprep.subr.bf16.mxu0 0
    %968 = vmatpush1.bf16.xpose.msra.mxu0 0
    %969 = vmatprep.subr.bf16.mxu0 0
    %970 = vmatpush1.bf16.xpose.msra.mxu0 0
    %971 = vmatprep.subr.bf16.mxu0 0
    %972 = vmatpush1.bf16.xpose.msra.mxu0 0
    %973 = vmatprep.subr.bf16.mxu0 0
    %974 = vmatpush1.bf16.xpose.msra.mxu0 0
    %975 = vmatprep.subr.bf16.mxu0 0
    %976 = vmatpush1.bf16.xpose.msra.mxu0 0
    %977 = vmatprep.subr.bf16.mxu0 0
    %978 = vmatpush1.bf16.xpose.msra.mxu0 0
    %979 = vmatprep.subr.bf16.mxu0 0
    %980 = vmatpush1.bf16.xpose.msra.mxu0 0
    %981 = vmatprep.subr.bf16.mxu0 0
    %982 = vmatpush1.bf16.xpose.msra.mxu0 0
    %983 = vmatprep.subr.bf16.mxu0 0
    %984 = vmatpush1.bf16.xpose.msra.mxu0 0
    %985 = vmatprep.subr.bf16.mxu0 0
    %986 = vmatpush1.bf16.xpose.msra.mxu0 0
    %987 = vmatprep.mubr.bf16.mxu0 0
    %988 = vmatmul.mubr.bf16.gmra.mrb[0].mxu0 %v950
    %v989 = vpop.f32.mrb[0].mxu0
    %v990 = vadd.f32 0.0, %v989
    %v991 = vpop.f32.mrb[0].mxu0
    %v992 = vpop.f32.mrb[0].mxu0
    %v993 = vpop.f32.mrb[0].mxu0
    %994 = vdwg.mxu0
    %v995 = vsel %vm381, %v990, -inf
    %v996 = vsub.f32 %v995, %v508
    %v997 = vsel %vm382, %v996, -inf
    %998 = vmax.xlane.f32.xlu0 %v997
    %v999 = vpop.xlane.xlu0 %998
    %v1000 = vsub.f32 %v996, %v999
    %v1001 = vmul.f32 %v1000, 1.442695
    %v1002 = vpow.pop %v1001
    %v1003 = vsel %vm382, %v1002, 0.0
    %1004 = vadd.xlane.f32.xlu0 %v1003
    %v1005 = vpop.xlane.xlu0 %1004
    %v1006 = vrcp.pop %v1005
    %v1007 = vmul.f32 %v1002, %v1006
    %v1008 = vpack.c.bf16 %v1007, %v1007
    %1009 = vrot.lane.b32.xlu0 %v376, 104
    %v1010 = vpop.permute.xlu0 %1009
    %v1012 = vsel %vm382, %v1008, 0
    %v1015 = vsel %vm527, %v1010, 0
    %1017 = vmatprep.subr.bf16.mxu0 0
    %1018 = vmatpush1.bf16.msra.mxu0 %v1015
    %1019 = vmatprep.subr.bf16.mxu0 0
    %1020 = vmatpush1.bf16.msra.mxu0 0
    %1021 = vmatprep.subr.bf16.mxu0 0
    %1022 = vmatpush1.bf16.msra.mxu0 0
    %1023 = vmatprep.subr.bf16.mxu0 0
    %1024 = vmatpush1.bf16.msra.mxu0 0
    %1025 = vmatprep.subr.bf16.mxu0 0
    %1026 = vmatpush1.bf16.msra.mxu0 0
    %1027 = vmatprep.subr.bf16.mxu0 0
    %1028 = vmatpush1.bf16.msra.mxu0 0
    %1029 = vmatprep.subr.bf16.mxu0 0
    %1030 = vmatpush1.bf16.msra.mxu0 0
    %1031 = vmatprep.subr.bf16.mxu0 0
    %1032 = vmatpush1.bf16.msra.mxu0 0
    %1033 = vmatprep.subr.bf16.mxu0 0
    %1034 = vmatpush1.bf16.msra.mxu0 0
    %1035 = vmatprep.subr.bf16.mxu0 0
    %1036 = vmatpush1.bf16.msra.mxu0 0
    %1037 = vmatprep.subr.bf16.mxu0 0
    %1038 = vmatpush1.bf16.msra.mxu0 0
    %1039 = vmatprep.subr.bf16.mxu0 0
    %1040 = vmatpush1.bf16.msra.mxu0 0
    %1041 = vmatprep.subr.bf16.mxu0 0
    %1042 = vmatpush1.bf16.msra.mxu0 0
    %1043 = vmatprep.subr.bf16.mxu0 0
    %1044 = vmatpush1.bf16.msra.mxu0 0
    %1045 = vmatprep.subr.bf16.mxu0 0
    %1046 = vmatpush1.bf16.msra.mxu0 0
    %1047 = vmatprep.subr.bf16.mxu0 0
    %1048 = vmatpush1.bf16.msra.mxu0 0
    %1049 = vmatprep.mubr.bf16.mxu0 0
    %1050 = vmatmul.mubr.bf16.gmra.mrb[0].mxu0 %v1012
    %v1051 = vpop.f32.mrb[0].mxu0
    %v1052 = vadd.f32 0.0, %v1051
    %v1053 = vpop.f32.mrb[0].mxu0
    %v1054 = vpop.f32.mrb[0].mxu0
    %v1055 = vpop.f32.mrb[0].mxu0
    %1056 = vdwg.mxu0
    %v1057 = vpack.c.bf16 %v1052, %v1052
    %s1058 = scalar_lea.vmem [#allocation10], 12
    %v1059 = vld [vmem:[%s1058] sm:$0xf]
    %v1061 = vsel %vm382, %v1057, 0
    %v1064 = vsel %vm527, %v1059, 0
    %1066 = vmatprep.subr.bf16.mxu0 0
    %1067 = vmatpush1.bf16.msra.mxu0 %v1064
    %1068 = vmatprep.subr.bf16.mxu0 0
    %1069 = vmatpush1.bf16.msra.mxu0 0
    %1070 = vmatprep.subr.bf16.mxu0 0
    %1071 = vmatpush1.bf16.msra.mxu0 0
    %1072 = vmatprep.subr.bf16.mxu0 0
    %1073 = vmatpush1.bf16.msra.mxu0 0
    %1074 = vmatprep.subr.bf16.mxu0 0
    %1075 = vmatpush1.bf16.msra.mxu0 0
    %1076 = vmatprep.subr.bf16.mxu0 0
    %1077 = vmatpush1.bf16.msra.mxu0 0
    %1078 = vmatprep.subr.bf16.mxu0 0
    %1079 = vmatpush1.bf16.msra.mxu0 0
    %1080 = vmatprep.subr.bf16.mxu0 0
    %1081 = vmatpush1.bf16.msra.mxu0 0
    %1082 = vmatprep.subr.bf16.mxu0 0
    %1083 = vmatpush1.bf16.msra.mxu0 0
    %1084 = vmatprep.subr.bf16.mxu0 0
    %1085 = vmatpush1.bf16.msra.mxu0 0
    %1086 = vmatprep.subr.bf16.mxu0 0
    %1087 = vmatpush1.bf16.msra.mxu0 0
    %1088 = vmatprep.subr.bf16.mxu0 0
    %1089 = vmatpush1.bf16.msra.mxu0 0
    %1090 = vmatprep.subr.bf16.mxu0 0
    %1091 = vmatpush1.bf16.msra.mxu0 0
    %1092 = vmatprep.subr.bf16.mxu0 0
    %1093 = vmatpush1.bf16.msra.mxu0 0
    %1094 = vmatprep.subr.bf16.mxu0 0
    %1095 = vmatpush1.bf16.msra.mxu0 0
    %1096 = vmatprep.subr.bf16.mxu0 0
    %1097 = vmatpush1.bf16.msra.mxu0 0
    %1098 = vmatprep.mubr.bf16.mxu0 0
    %1099 = vmatmul.mubr.bf16.gmra.mrb[0].mxu0 %v1061
    %v1100 = vpop.f32.mrb[0].mxu0
    %v1101 = vadd.f32 0.0, %v1100
    %v1102 = vpop.f32.mrb[0].mxu0
    %v1103 = vpop.f32.mrb[0].mxu0
    %v1104 = vpop.f32.mrb[0].mxu0
    %1105 = vdwg.mxu0
    %v1106 = vadd.f32 %v944, %v1101
    %1107 = vst.msk [vmem:[#allocation11] sm:$0xff] %vm124, %v1106
    %1108 = vst.msk [vmem:[#allocation12] sm:$0xff] %vm382, %v508
    %v1109 = vrot.slane %v374, 4
    %v1110 = vrot.slane %v375, 4
    %v1112 = vsel %vm382, %v1109, 0
    %v1115 = vsel %vm382, %v1110, 0
    %1117 = vmatprep.subr.bf16.mxu0 0
    %1118 = vmatpush1.bf16.xpose.msra.mxu0 %v1115
    %1119 = vmatprep.subr.bf16.mxu0 0
    %1120 = vmatpush1.bf16.xpose.msra.mxu0 0
    %1121 = vmatprep.subr.bf16.mxu0 0
    %1122 = vmatpush1.bf16.xpose.msra.mxu0 0
    %1123 = vmatprep.subr.bf16.mxu0 0
    %1124 = vmatpush1.bf16.xpose.msra.mxu0 0
    %1125 = vmatprep.subr.bf16.mxu0 0
    %1126 = vmatpush1.bf16.xpose.msra.mxu0 0
    %1127 = vmatprep.subr.bf16.mxu0 0
    %1128 = vmatpush1.bf16.xpose.msra.mxu0 0
    %1129 = vmatprep.subr.bf16.mxu0 0
    %1130 = vmatpush1.bf16.xpose.msra.mxu0 0
    %1131 = vmatprep.subr.bf16.mxu0 0
    %1132 = vmatpush1.bf16.xpose.msra.mxu0 0
    %1133 = vmatprep.subr.bf16.mxu0 0
    %1134 = vmatpush1.bf16.xpose.msra.mxu0 0
    %1135 = vmatprep.subr.bf16.mxu0 0
    %1136 = vmatpush1.bf16.xpose.msra.mxu0 0
    %1137 = vmatprep.subr.bf16.mxu0 0
    %1138 = vmatpush1.bf16.xpose.msra.mxu0 0
    %1139 = vmatprep.subr.bf16.mxu0 0
    %1140 = vmatpush1.bf16.xpose.msra.mxu0 0
    %1141 = vmatprep.subr.bf16.mxu0 0
    %1142 = vmatpush1.bf16.xpose.msra.mxu0 0
    %1143 = vmatprep.subr.bf16.mxu0 0
    %1144 = vmatpush1.bf16.xpose.msra.mxu0 0
    %1145 = vmatprep.subr.bf16.mxu0 0
    %1146 = vmatpush1.bf16.xpose.msra.mxu0 0
    %1147 = vmatprep.subr.bf16.mxu0 0
    %1148 = vmatpush1.bf16.xpose.msra.mxu0 0
    %1149 = vmatprep.mubr.bf16.mxu0 0
    %1150 = vmatmul.mubr.bf16.gmra.mrb[0].mxu0 %v1112
    %v1151 = vpop.f32.mrb[0].mxu0
    %v1152 = vadd.f32 0.0, %v1151
    %v1153 = vpop.f32.mrb[0].mxu0
    %v1154 = vpop.f32.mrb[0].mxu0
    %v1155 = vpop.f32.mrb[0].mxu0
    %1156 = vdwg.mxu0
    %v1157 = vsel %vm381, %v1152, -inf
    %v1158 = vmax.f32 %v1157, 0.0
    %v1159 = vsel %vm433, 0.0, %v1158
    %1160 = vmatprep.subr.mxu0 0.0
    %1161 = vmatpush1.msra.mxu0 %v1159
    %1162 = vmatprep.subr.mxu0 0.0
    %1163 = vmatpush1.msra.mxu0 0.0
    %1164 = vmatprep.subr.mxu0 0.0
    %1165 = vmatpush1.msra.mxu0 0.0
    %1166 = vmatprep.subr.mxu0 0.0
    %1167 = vmatpush1.msra.mxu0 0.0
    %1168 = vmatprep.subr.mxu0 0.0
    %1169 = vmatpush1.msra.mxu0 0.0
    %1170 = vmatprep.subr.mxu0 0.0
    %1171 = vmatpush1.msra.mxu0 0.0
    %1172 = vmatprep.subr.mxu0 0.0
    %1173 = vmatpush1.msra.mxu0 0.0
    %1174 = vmatprep.subr.mxu0 0.0
    %1175 = vmatpush1.msra.mxu0 0.0
    %1176 = vmatprep.subr.mxu0 0.0
    %1177 = vmatpush1.msra.mxu0 0.0
    %1178 = vmatprep.subr.mxu0 0.0
    %1179 = vmatpush1.msra.mxu0 0.0
    %1180 = vmatprep.subr.mxu0 0.0
    %1181 = vmatpush1.msra.mxu0 0.0
    %1182 = vmatprep.subr.mxu0 0.0
    %1183 = vmatpush1.msra.mxu0 0.0
    %1184 = vmatprep.subr.mxu0 0.0
    %1185 = vmatpush1.msra.mxu0 0.0
    %1186 = vmatprep.subr.mxu0 0.0
    %1187 = vmatpush1.msra.mxu0 0.0
    %1188 = vmatprep.subr.mxu0 0.0
    %1189 = vmatpush1.msra.mxu0 0.0
    %1190 = vmatprep.subr.mxu0 0.0
    %1191 = vmatpush1.msra.mxu0 0.0
    %1192 = vmatprep.subr.mxu0 0.0
    %1193 = vmatpush1.msra.mxu0 0.0
    %1194 = vmatprep.subr.mxu0 0.0
    %1195 = vmatpush1.msra.mxu0 0.0
    %1196 = vmatprep.subr.mxu0 0.0
    %1197 = vmatpush1.msra.mxu0 0.0
    %1198 = vmatprep.subr.mxu0 0.0
    %1199 = vmatpush1.msra.mxu0 0.0
    %1200 = vmatprep.subr.mxu0 0.0
    %1201 = vmatpush1.msra.mxu0 0.0
    %1202 = vmatprep.subr.mxu0 0.0
    %1203 = vmatpush1.msra.mxu0 0.0
    %1204 = vmatprep.subr.mxu0 0.0
    %1205 = vmatpush1.msra.mxu0 0.0
    %1206 = vmatprep.subr.mxu0 0.0
    %1207 = vmatpush1.msra.mxu0 0.0
    %1208 = vmatprep.subr.mxu0 0.0
    %1209 = vmatpush1.msra.mxu0 0.0
    %1210 = vmatprep.subr.mxu0 0.0
    %1211 = vmatpush1.msra.mxu0 0.0
    %1212 = vmatprep.subr.mxu0 0.0
    %1213 = vmatpush1.msra.mxu0 0.0
    %1214 = vmatprep.subr.mxu0 0.0
    %1215 = vmatpush1.msra.mxu0 0.0
    %1216 = vmatprep.subr.mxu0 0.0
    %1217 = vmatpush1.msra.mxu0 0.0
    %1218 = vmatprep.subr.mxu0 0.0
    %1219 = vmatpush1.msra.mxu0 0.0
    %1220 = vmatprep.subr.mxu0 0.0
    %1221 = vmatpush1.msra.mxu0 0.0
    %1222 = vmatprep.subr.mxu0 0.0
    %1223 = vmatpush1.msra.mxu0 0.0
    %1224 = vmatprep.mubr.f32.mxu0 0.0
    %1225 = vmatmul.mubr.f32.gmra.mrb[0].mxu0 %v439
    %v1226 = vpop.f32.mrb[0].mxu0
    %v1227 = vadd.f32 0.0, %v1226
    %v1228 = vpop.f32.mrb[0].mxu0
    %1229 = vdwg.mxu0
    %v1230 = vsub.f32 %v1157, %v1227
    %v1231 = vsel %vm382, %v1230, -inf
    %1232 = vmax.xlane.f32.xlu0 %v1231
    %v1233 = vpop.xlane.xlu0 %1232
    %v1234 = vsub.f32 %v1230, %v1233
    %v1235 = vmul.f32 %v1234, 1.442695
    %v1236 = vpow.pop %v1235
    %v1237 = vsel %vm382, %v1236, 0.0
    %1238 = vadd.xlane.f32.xlu0 %v1237
    %v1239 = vpop.xlane.xlu0 %1238
    %v1240 = vrcp.pop %v1239
    %v1241 = vmul.f32 %v1236, %v1240
    %v1242 = vpack.c.bf16 %v1241, %v1241
    %v1243 = vrot.slane %v376, 4
    %v1245 = vsel %vm382, %v1242, 0
    %v1248 = vsel %vm527, %v1243, 0
    %1250 = vmatprep.subr.bf16.mxu0 0
    %1251 = vmatpush1.bf16.msra.mxu0 %v1248
    %1252 = vmatprep.subr.bf16.mxu0 0
    %1253 = vmatpush1.bf16.msra.mxu0 0
    %1254 = vmatprep.subr.bf16.mxu0 0
    %1255 = vmatpush1.bf16.msra.mxu0 0
    %1256 = vmatprep.subr.bf16.mxu0 0
    %1257 = vmatpush1.bf16.msra.mxu0 0
    %1258 = vmatprep.subr.bf16.mxu0 0
    %1259 = vmatpush1.bf16.msra.mxu0 0
    %1260 = vmatprep.subr.bf16.mxu0 0
    %1261 = vmatpush1.bf16.msra.mxu0 0
    %1262 = vmatprep.subr.bf16.mxu0 0
    %1263 = vmatpush1.bf16.msra.mxu0 0
    %1264 = vmatprep.subr.bf16.mxu0 0
    %1265 = vmatpush1.bf16.msra.mxu0 0
    %1266 = vmatprep.subr.bf16.mxu0 0
    %1267 = vmatpush1.bf16.msra.mxu0 0
    %1268 = vmatprep.subr.bf16.mxu0 0
    %1269 = vmatpush1.bf16.msra.mxu0 0
    %1270 = vmatprep.subr.bf16.mxu0 0
    %1271 = vmatpush1.bf16.msra.mxu0 0
    %1272 = vmatprep.subr.bf16.mxu0 0
    %1273 = vmatpush1.bf16.msra.mxu0 0
    %1274 = vmatprep.subr.bf16.mxu0 0
    %1275 = vmatpush1.bf16.msra.mxu0 0
    %1276 = vmatprep.subr.bf16.mxu0 0
    %1277 = vmatpush1.bf16.msra.mxu0 0
    %1278 = vmatprep.subr.bf16.mxu0 0
    %1279 = vmatpush1.bf16.msra.mxu0 0
    %1280 = vmatprep.subr.bf16.mxu0 0
    %1281 = vmatpush1.bf16.msra.mxu0 0
    %1282 = vmatprep.mubr.bf16.mxu0 0
    %1283 = vmatmul.mubr.bf16.gmra.mrb[0].mxu0 %v1245
    %v1284 = vpop.f32.mrb[0].mxu0
    %v1285 = vadd.f32 0.0, %v1284
    %v1286 = vpop.f32.mrb[0].mxu0
    %v1287 = vpop.f32.mrb[0].mxu0
    %v1288 = vpop.f32.mrb[0].mxu0
    %1289 = vdwg.mxu0
    %v1290 = vpack.c.bf16 %v1285, %v1285
    %v1291 = vld [vmem:[#allocation10] sm:$0xf]
    %1292 = vrot.lane.b32.xlu0 %v1109, 120
    %v1293 = vpop.permute.xlu0 %1292
    %1294 = vrot.lane.b32.xlu0 %v1110, 120
    %v1295 = vpop.permute.xlu0 %1294
    %v1297 = vsel %vm382, %v1293, 0
    %v1300 = vsel %vm382, %v1295, 0
    %1302 = vmatprep.subr.bf16.mxu0 0
    %1303 = vmatpush1.bf16.xpose.msra.mxu0 %v1300
    %1304 = vmatprep.subr.bf16.mxu0 0
    %1305 = vmatpush1.bf16.xpose.msra.mxu0 0
    %1306 = vmatprep.subr.bf16.mxu0 0
    %1307 = vmatpush1.bf16.xpose.msra.mxu0 0
    %1308 = vmatprep.subr.bf16.mxu0 0
    %1309 = vmatpush1.bf16.xpose.msra.mxu0 0
    %1310 = vmatprep.subr.bf16.mxu0 0
    %1311 = vmatpush1.bf16.xpose.msra.mxu0 0
    %1312 = vmatprep.subr.bf16.mxu0 0
    %1313 = vmatpush1.bf16.xpose.msra.mxu0 0
    %1314 = vmatprep.subr.bf16.mxu0 0
    %1315 = vmatpush1.bf16.xpose.msra.mxu0 0
    %1316 = vmatprep.subr.bf16.mxu0 0
    %1317 = vmatpush1.bf16.xpose.msra.mxu0 0
    %1318 = vmatprep.subr.bf16.mxu0 0
    %1319 = vmatpush1.bf16.xpose.msra.mxu0 0
    %1320 = vmatprep.subr.bf16.mxu0 0
    %1321 = vmatpush1.bf16.xpose.msra.mxu0 0
    %1322 = vmatprep.subr.bf16.mxu0 0
    %1323 = vmatpush1.bf16.xpose.msra.mxu0 0
    %1324 = vmatprep.subr.bf16.mxu0 0
    %1325 = vmatpush1.bf16.xpose.msra.mxu0 0
    %1326 = vmatprep.subr.bf16.mxu0 0
    %1327 = vmatpush1.bf16.xpose.msra.mxu0 0
    %1328 = vmatprep.subr.bf16.mxu0 0
    %1329 = vmatpush1.bf16.xpose.msra.mxu0 0
    %1330 = vmatprep.subr.bf16.mxu0 0
    %1331 = vmatpush1.bf16.xpose.msra.mxu0 0
    %1332 = vmatprep.subr.bf16.mxu0 0
    %1333 = vmatpush1.bf16.xpose.msra.mxu0 0
    %1334 = vmatprep.mubr.bf16.mxu0 0
    %1335 = vmatmul.mubr.bf16.gmra.mrb[0].mxu0 %v1297
    %v1336 = vpop.f32.mrb[0].mxu0
    %v1337 = vadd.f32 0.0, %v1336
    %v1338 = vpop.f32.mrb[0].mxu0
    %v1339 = vpop.f32.mrb[0].mxu0
    %v1340 = vpop.f32.mrb[0].mxu0
    %1341 = vdwg.mxu0
    %v1342 = vsel %vm381, %v1337, -inf
    %v1343 = vsub.f32 %v1342, %v1227
    %v1344 = vsel %vm382, %v1343, -inf
    %1345 = vmax.xlane.f32.xlu0 %v1344
    %v1346 = vpop.xlane.xlu0 %1345
    %v1347 = vsub.f32 %v1343, %v1346
    %v1348 = vmul.f32 %v1347, 1.442695
    %v1349 = vpow.pop %v1348
    %v1350 = vsel %vm382, %v1349, 0.0
    %1351 = vadd.xlane.f32.xlu0 %v1350
    %v1352 = vpop.xlane.xlu0 %1351
    %v1353 = vrcp.pop %v1352
    %v1354 = vmul.f32 %v1349, %v1353
    %v1355 = vpack.c.bf16 %v1354, %v1354
    %1356 = vrot.lane.b32.xlu0 %v1243, 120
    %v1357 = vpop.permute.xlu0 %1356
    %v1359 = vsel %vm382, %v1355, 0
    %v1362 = vsel %vm527, %v1357, 0
    %1364 = vmatprep.subr.bf16.mxu0 0
    %1365 = vmatpush1.bf16.msra.mxu0 %v1362
    %1366 = vmatprep.subr.bf16.mxu0 0
    %1367 = vmatpush1.bf16.msra.mxu0 0
    %1368 = vmatprep.subr.bf16.mxu0 0
    %1369 = vmatpush1.bf16.msra.mxu0 0
    %1370 = vmatprep.subr.bf16.mxu0 0
    %1371 = vmatpush1.bf16.msra.mxu0 0
    %1372 = vmatprep.subr.bf16.mxu0 0
    %1373 = vmatpush1.bf16.msra.mxu0 0
    %1374 = vmatprep.subr.bf16.mxu0 0
    %1375 = vmatpush1.bf16.msra.mxu0 0
    %1376 = vmatprep.subr.bf16.mxu0 0
    %1377 = vmatpush1.bf16.msra.mxu0 0
    %1378 = vmatprep.subr.bf16.mxu0 0
    %1379 = vmatpush1.bf16.msra.mxu0 0
    %1380 = vmatprep.subr.bf16.mxu0 0
    %1381 = vmatpush1.bf16.msra.mxu0 0
    %1382 = vmatprep.subr.bf16.mxu0 0
    %1383 = vmatpush1.bf16.msra.mxu0 0
    %1384 = vmatprep.subr.bf16.mxu0 0
    %1385 = vmatpush1.bf16.msra.mxu0 0
    %1386 = vmatprep.subr.bf16.mxu0 0
    %1387 = vmatpush1.bf16.msra.mxu0 0
    %1388 = vmatprep.subr.bf16.mxu0 0
    %1389 = vmatpush1.bf16.msra.mxu0 0
    %1390 = vmatprep.subr.bf16.mxu0 0
    %1391 = vmatpush1.bf16.msra.mxu0 0
    %1392 = vmatprep.subr.bf16.mxu0 0
    %1393 = vmatpush1.bf16.msra.mxu0 0
    %1394 = vmatprep.subr.bf16.mxu0 0
    %1395 = vmatpush1.bf16.msra.mxu0 0
    %1396 = vmatprep.mubr.bf16.mxu0 0
    %1397 = vmatmul.mubr.bf16.gmra.mrb[0].mxu0 %v1359
    %v1398 = vpop.f32.mrb[0].mxu0
    %v1399 = vadd.f32 0.0, %v1398
    %v1400 = vpop.f32.mrb[0].mxu0
    %v1401 = vpop.f32.mrb[0].mxu0
    %v1402 = vpop.f32.mrb[0].mxu0
    %1403 = vdwg.mxu0
    %v1404 = vpack.c.bf16 %v1399, %v1399
    %v1405 = vld [vmem:[%s689] sm:$0xf]
    %v1407 = vsel %vm382, %v1404, 0
    %v1410 = vsel %vm527, %v1405, 0
    %1412 = vmatprep.subr.bf16.mxu0 0
    %1413 = vmatpush1.bf16.msra.mxu0 %v1410
    %1414 = vmatprep.subr.bf16.mxu0 0
    %1415 = vmatpush1.bf16.msra.mxu0 0
    %1416 = vmatprep.subr.bf16.mxu0 0
    %1417 = vmatpush1.bf16.msra.mxu0 0
    %1418 = vmatprep.subr.bf16.mxu0 0
    %1419 = vmatpush1.bf16.msra.mxu0 0
    %1420 = vmatprep.subr.bf16.mxu0 0
    %1421 = vmatpush1.bf16.msra.mxu0 0
    %1422 = vmatprep.subr.bf16.mxu0 0
    %1423 = vmatpush1.bf16.msra.mxu0 0
    %1424 = vmatprep.subr.bf16.mxu0 0
    %1425 = vmatpush1.bf16.msra.mxu0 0
    %1426 = vmatprep.subr.bf16.mxu0 0
    %1427 = vmatpush1.bf16.msra.mxu0 0
    %1428 = vmatprep.subr.bf16.mxu0 0
    %1429 = vmatpush1.bf16.msra.mxu0 0
    %1430 = vmatprep.subr.bf16.mxu0 0
    %1431 = vmatpush1.bf16.msra.mxu0 0
    %1432 = vmatprep.subr.bf16.mxu0 0
    %1433 = vmatpush1.bf16.msra.mxu0 0
    %1434 = vmatprep.subr.bf16.mxu0 0
    %1435 = vmatpush1.bf16.msra.mxu0 0
    %1436 = vmatprep.subr.bf16.mxu0 0
    %1437 = vmatpush1.bf16.msra.mxu0 0
    %1438 = vmatprep.subr.bf16.mxu0 0
    %1439 = vmatpush1.bf16.msra.mxu0 0
    %1440 = vmatprep.subr.bf16.mxu0 0
    %1441 = vmatpush1.bf16.msra.mxu0 0
    %1442 = vmatprep.subr.bf16.mxu0 0
    %1443 = vmatpush1.bf16.msra.mxu0 0
    %1444 = vmatprep.mubr.bf16.mxu0 0
    %1445 = vmatmul.mubr.bf16.gmra.mrb[0].mxu0 %v1407
    %v1446 = vpop.f32.mrb[0].mxu0
    %v1447 = vadd.f32 0.0, %v1446
    %v1448 = vpop.f32.mrb[0].mxu0
    %v1449 = vpop.f32.mrb[0].mxu0
    %v1450 = vpop.f32.mrb[0].mxu0
    %1451 = vdwg.mxu0
    %v1453 = vsel %vm382, %v1290, 0
    %v1456 = vsel %vm527, %v1291, 0
    %1458 = vmatprep.subr.bf16.mxu0 0
    %1459 = vmatpush1.bf16.msra.mxu0 %v1456
    %1460 = vmatprep.subr.bf16.mxu0 0
    %1461 = vmatpush1.bf16.msra.mxu0 0
    %1462 = vmatprep.subr.bf16.mxu0 0
    %1463 = vmatpush1.bf16.msra.mxu0 0
    %1464 = vmatprep.subr.bf16.mxu0 0
    %1465 = vmatpush1.bf16.msra.mxu0 0
    %1466 = vmatprep.subr.bf16.mxu0 0
    %1467 = vmatpush1.bf16.msra.mxu0 0
    %1468 = vmatprep.subr.bf16.mxu0 0
    %1469 = vmatpush1.bf16.msra.mxu0 0
    %1470 = vmatprep.subr.bf16.mxu0 0
    %1471 = vmatpush1.bf16.msra.mxu0 0
    %1472 = vmatprep.subr.bf16.mxu0 0
    %1473 = vmatpush1.bf16.msra.mxu0 0
    %1474 = vmatprep.subr.bf16.mxu0 0
    %1475 = vmatpush1.bf16.msra.mxu0 0
    %1476 = vmatprep.subr.bf16.mxu0 0
    %1477 = vmatpush1.bf16.msra.mxu0 0
    %1478 = vmatprep.subr.bf16.mxu0 0
    %1479 = vmatpush1.bf16.msra.mxu0 0
    %1480 = vmatprep.subr.bf16.mxu0 0
    %1481 = vmatpush1.bf16.msra.mxu0 0
    %1482 = vmatprep.subr.bf16.mxu0 0
    %1483 = vmatpush1.bf16.msra.mxu0 0
    %1484 = vmatprep.subr.bf16.mxu0 0
    %1485 = vmatpush1.bf16.msra.mxu0 0
    %1486 = vmatprep.subr.bf16.mxu0 0
    %1487 = vmatpush1.bf16.msra.mxu0 0
    %1488 = vmatprep.subr.bf16.mxu0 0
    %1489 = vmatpush1.bf16.msra.mxu0 0
    %1490 = vmatprep.mubr.bf16.mxu0 0
    %1491 = vmatmul.mubr.bf16.gmra.mrb[0].mxu0 %v1453
    %v1492 = vpop.f32.mrb[0].mxu0
    %v1493 = vadd.f32 %v1447, %v1492
    %v1494 = vpop.f32.mrb[0].mxu0
    %v1495 = vpop.f32.mrb[0].mxu0
    %v1496 = vpop.f32.mrb[0].mxu0
    %1497 = vdwg.mxu0
    %1498 = vrot.lane.b32.xlu0 %v1109, 112
    %v1499 = vpop.permute.xlu0 %1498
    %1500 = vrot.lane.b32.xlu0 %v1110, 112
    %v1501 = vpop.permute.xlu0 %1500
    %v1503 = vsel %vm382, %v1499, 0
    %v1506 = vsel %vm382, %v1501, 0
    %1508 = vmatprep.subr.bf16.mxu0 0
    %1509 = vmatpush1.bf16.xpose.msra.mxu0 %v1506
    %1510 = vmatprep.subr.bf16.mxu0 0
    %1511 = vmatpush1.bf16.xpose.msra.mxu0 0
    %1512 = vmatprep.subr.bf16.mxu0 0
    %1513 = vmatpush1.bf16.xpose.msra.mxu0 0
    %1514 = vmatprep.subr.bf16.mxu0 0
    %1515 = vmatpush1.bf16.xpose.msra.mxu0 0
    %1516 = vmatprep.subr.bf16.mxu0 0
    %1517 = vmatpush1.bf16.xpose.msra.mxu0 0
    %1518 = vmatprep.subr.bf16.mxu0 0
    %1519 = vmatpush1.bf16.xpose.msra.mxu0 0
    %1520 = vmatprep.subr.bf16.mxu0 0
    %1521 = vmatpush1.bf16.xpose.msra.mxu0 0
    %1522 = vmatprep.subr.bf16.mxu0 0
    %1523 = vmatpush1.bf16.xpose.msra.mxu0 0
    %1524 = vmatprep.subr.bf16.mxu0 0
    %1525 = vmatpush1.bf16.xpose.msra.mxu0 0
    %1526 = vmatprep.subr.bf16.mxu0 0
    %1527 = vmatpush1.bf16.xpose.msra.mxu0 0
    %1528 = vmatprep.subr.bf16.mxu0 0
    %1529 = vmatpush1.bf16.xpose.msra.mxu0 0
    %1530 = vmatprep.subr.bf16.mxu0 0
    %1531 = vmatpush1.bf16.xpose.msra.mxu0 0
    %1532 = vmatprep.subr.bf16.mxu0 0
    %1533 = vmatpush1.bf16.xpose.msra.mxu0 0
    %1534 = vmatprep.subr.bf16.mxu0 0
    %1535 = vmatpush1.bf16.xpose.msra.mxu0 0
    %1536 = vmatprep.subr.bf16.mxu0 0
    %1537 = vmatpush1.bf16.xpose.msra.mxu0 0
    %1538 = vmatprep.subr.bf16.mxu0 0
    %1539 = vmatpush1.bf16.xpose.msra.mxu0 0
    %1540 = vmatprep.mubr.bf16.mxu0 0
    %1541 = vmatmul.mubr.bf16.gmra.mrb[0].mxu0 %v1503
    %v1542 = vpop.f32.mrb[0].mxu0
    %v1543 = vadd.f32 0.0, %v1542
    %v1544 = vpop.f32.mrb[0].mxu0
    %v1545 = vpop.f32.mrb[0].mxu0
    %v1546 = vpop.f32.mrb[0].mxu0
    %1547 = vdwg.mxu0
    %v1548 = vsel %vm381, %v1543, -inf
    %v1549 = vsub.f32 %v1548, %v1227
    %v1550 = vsel %vm382, %v1549, -inf
    %1551 = vmax.xlane.f32.xlu0 %v1550
    %v1552 = vpop.xlane.xlu0 %1551
    %v1553 = vsub.f32 %v1549, %v1552
    %v1554 = vmul.f32 %v1553, 1.442695
    %v1555 = vpow.pop %v1554
    %v1556 = vsel %vm382, %v1555, 0.0
    %1557 = vadd.xlane.f32.xlu0 %v1556
    %v1558 = vpop.xlane.xlu0 %1557
    %v1559 = vrcp.pop %v1558
    %v1560 = vmul.f32 %v1555, %v1559
    %v1561 = vpack.c.bf16 %v1560, %v1560
    %1562 = vrot.lane.b32.xlu0 %v1243, 112
    %v1563 = vpop.permute.xlu0 %1562
    %v1565 = vsel %vm382, %v1561, 0
    %v1568 = vsel %vm527, %v1563, 0
    %1570 = vmatprep.subr.bf16.mxu0 0
    %1571 = vmatpush1.bf16.msra.mxu0 %v1568
    %1572 = vmatprep.subr.bf16.mxu0 0
    %1573 = vmatpush1.bf16.msra.mxu0 0
    %1574 = vmatprep.subr.bf16.mxu0 0
    %1575 = vmatpush1.bf16.msra.mxu0 0
    %1576 = vmatprep.subr.bf16.mxu0 0
    %1577 = vmatpush1.bf16.msra.mxu0 0
    %1578 = vmatprep.subr.bf16.mxu0 0
    %1579 = vmatpush1.bf16.msra.mxu0 0
    %1580 = vmatprep.subr.bf16.mxu0 0
    %1581 = vmatpush1.bf16.msra.mxu0 0
    %1582 = vmatprep.subr.bf16.mxu0 0
    %1583 = vmatpush1.bf16.msra.mxu0 0
    %1584 = vmatprep.subr.bf16.mxu0 0
    %1585 = vmatpush1.bf16.msra.mxu0 0
    %1586 = vmatprep.subr.bf16.mxu0 0
    %1587 = vmatpush1.bf16.msra.mxu0 0
    %1588 = vmatprep.subr.bf16.mxu0 0
    %1589 = vmatpush1.bf16.msra.mxu0 0
    %1590 = vmatprep.subr.bf16.mxu0 0
    %1591 = vmatpush1.bf16.msra.mxu0 0
    %1592 = vmatprep.subr.bf16.mxu0 0
    %1593 = vmatpush1.bf16.msra.mxu0 0
    %1594 = vmatprep.subr.bf16.mxu0 0
    %1595 = vmatpush1.bf16.msra.mxu0 0
    %1596 = vmatprep.subr.bf16.mxu0 0
    %1597 = vmatpush1.bf16.msra.mxu0 0
    %1598 = vmatprep.subr.bf16.mxu0 0
    %1599 = vmatpush1.bf16.msra.mxu0 0
    %1600 = vmatprep.subr.bf16.mxu0 0
    %1601 = vmatpush1.bf16.msra.mxu0 0
    %1602 = vmatprep.mubr.bf16.mxu0 0
    %1603 = vmatmul.mubr.bf16.gmra.mrb[0].mxu0 %v1565
    %v1604 = vpop.f32.mrb[0].mxu0
    %v1605 = vadd.f32 0.0, %v1604
    %v1606 = vpop.f32.mrb[0].mxu0
    %v1607 = vpop.f32.mrb[0].mxu0
    %v1608 = vpop.f32.mrb[0].mxu0
    %1609 = vdwg.mxu0
    %v1610 = vpack.c.bf16 %v1605, %v1605
    %v1611 = vld [vmem:[%s896] sm:$0xf]
    %v1613 = vsel %vm382, %v1610, 0
    %v1616 = vsel %vm527, %v1611, 0
    %1618 = vmatprep.subr.bf16.mxu0 0
    %1619 = vmatpush1.bf16.msra.mxu0 %v1616
    %1620 = vmatprep.subr.bf16.mxu0 0
    %1621 = vmatpush1.bf16.msra.mxu0 0
    %1622 = vmatprep.subr.bf16.mxu0 0
    %1623 = vmatpush1.bf16.msra.mxu0 0
    %1624 = vmatprep.subr.bf16.mxu0 0
    %1625 = vmatpush1.bf16.msra.mxu0 0
    %1626 = vmatprep.subr.bf16.mxu0 0
    %1627 = vmatpush1.bf16.msra.mxu0 0
    %1628 = vmatprep.subr.bf16.mxu0 0
    %1629 = vmatpush1.bf16.msra.mxu0 0
    %1630 = vmatprep.subr.bf16.mxu0 0
    %1631 = vmatpush1.bf16.msra.mxu0 0
    %1632 = vmatprep.subr.bf16.mxu0 0
    %1633 = vmatpush1.bf16.msra.mxu0 0
    %1634 = vmatprep.subr.bf16.mxu0 0
    %1635 = vmatpush1.bf16.msra.mxu0 0
    %1636 = vmatprep.subr.bf16.mxu0 0
    %1637 = vmatpush1.bf16.msra.mxu0 0
    %1638 = vmatprep.subr.bf16.mxu0 0
    %1639 = vmatpush1.bf16.msra.mxu0 0
    %1640 = vmatprep.subr.bf16.mxu0 0
    %1641 = vmatpush1.bf16.msra.mxu0 0
    %1642 = vmatprep.subr.bf16.mxu0 0
    %1643 = vmatpush1.bf16.msra.mxu0 0
    %1644 = vmatprep.subr.bf16.mxu0 0
    %1645 = vmatpush1.bf16.msra.mxu0 0
    %1646 = vmatprep.subr.bf16.mxu0 0
    %1647 = vmatpush1.bf16.msra.mxu0 0
    %1648 = vmatprep.subr.bf16.mxu0 0
    %1649 = vmatpush1.bf16.msra.mxu0 0
    %1650 = vmatprep.mubr.bf16.mxu0 0
    %1651 = vmatmul.mubr.bf16.gmra.mrb[0].mxu0 %v1613
    %v1652 = vpop.f32.mrb[0].mxu0
    %v1653 = vadd.f32 0.0, %v1652
    %v1654 = vpop.f32.mrb[0].mxu0
    %v1655 = vpop.f32.mrb[0].mxu0
    %v1656 = vpop.f32.mrb[0].mxu0
    %1657 = vdwg.mxu0
    %v1658 = vadd.f32 %v1493, %v1653
    %1659 = vrot.lane.b32.xlu0 %v1109, 104
    %v1660 = vpop.permute.xlu0 %1659
    %1661 = vrot.lane.b32.xlu0 %v1110, 104
    %v1662 = vpop.permute.xlu0 %1661
    %v1664 = vsel %vm382, %v1660, 0
    %v1667 = vsel %vm382, %v1662, 0
    %1669 = vmatprep.subr.bf16.mxu0 0
    %1670 = vmatpush1.bf16.xpose.msra.mxu0 %v1667
    %1671 = vmatprep.subr.bf16.mxu0 0
    %1672 = vmatpush1.bf16.xpose.msra.mxu0 0
    %1673 = vmatprep.subr.bf16.mxu0 0
    %1674 = vmatpush1.bf16.xpose.msra.mxu0 0
    %1675 = vmatprep.subr.bf16.mxu0 0
    %1676 = vmatpush1.bf16.xpose.msra.mxu0 0
    %1677 = vmatprep.subr.bf16.mxu0 0
    %1678 = vmatpush1.bf16.xpose.msra.mxu0 0
    %1679 = vmatprep.subr.bf16.mxu0 0
    %1680 = vmatpush1.bf16.xpose.msra.mxu0 0
    %1681 = vmatprep.subr.bf16.mxu0 0
    %1682 = vmatpush1.bf16.xpose.msra.mxu0 0
    %1683 = vmatprep.subr.bf16.mxu0 0
    %1684 = vmatpush1.bf16.xpose.msra.mxu0 0
    %1685 = vmatprep.subr.bf16.mxu0 0
    %1686 = vmatpush1.bf16.xpose.msra.mxu0 0
    %1687 = vmatprep.subr.bf16.mxu0 0
    %1688 = vmatpush1.bf16.xpose.msra.mxu0 0
    %1689 = vmatprep.subr.bf16.mxu0 0
    %1690 = vmatpush1.bf16.xpose.msra.mxu0 0
    %1691 = vmatprep.subr.bf16.mxu0 0
    %1692 = vmatpush1.bf16.xpose.msra.mxu0 0
    %1693 = vmatprep.subr.bf16.mxu0 0
    %1694 = vmatpush1.bf16.xpose.msra.mxu0 0
    %1695 = vmatprep.subr.bf16.mxu0 0
    %1696 = vmatpush1.bf16.xpose.msra.mxu0 0
    %1697 = vmatprep.subr.bf16.mxu0 0
    %1698 = vmatpush1.bf16.xpose.msra.mxu0 0
    %1699 = vmatprep.subr.bf16.mxu0 0
    %1700 = vmatpush1.bf16.xpose.msra.mxu0 0
    %1701 = vmatprep.mubr.bf16.mxu0 0
    %1702 = vmatmul.mubr.bf16.gmra.mrb[0].mxu0 %v1664
    %v1703 = vpop.f32.mrb[0].mxu0
    %v1704 = vadd.f32 0.0, %v1703
    %v1705 = vpop.f32.mrb[0].mxu0
    %v1706 = vpop.f32.mrb[0].mxu0
    %v1707 = vpop.f32.mrb[0].mxu0
    %1708 = vdwg.mxu0
    %v1709 = vsel %vm381, %v1704, -inf
    %v1710 = vsub.f32 %v1709, %v1227
    %v1711 = vsel %vm382, %v1710, -inf
    %1712 = vmax.xlane.f32.xlu0 %v1711
    %v1713 = vpop.xlane.xlu0 %1712
    %v1714 = vsub.f32 %v1710, %v1713
    %v1715 = vmul.f32 %v1714, 1.442695
    %v1716 = vpow.pop %v1715
    %v1717 = vsel %vm382, %v1716, 0.0
    %1718 = vadd.xlane.f32.xlu0 %v1717
    %v1719 = vpop.xlane.xlu0 %1718
    %v1720 = vrcp.pop %v1719
    %v1721 = vmul.f32 %v1716, %v1720
    %v1722 = vpack.c.bf16 %v1721, %v1721
    %1723 = vrot.lane.b32.xlu0 %v1243, 104
    %v1724 = vpop.permute.xlu0 %1723
    %v1726 = vsel %vm382, %v1722, 0
    %v1729 = vsel %vm527, %v1724, 0
    %1731 = vmatprep.subr.bf16.mxu0 0
    %1732 = vmatpush1.bf16.msra.mxu0 %v1729
    %1733 = vmatprep.subr.bf16.mxu0 0
    %1734 = vmatpush1.bf16.msra.mxu0 0
    %1735 = vmatprep.subr.bf16.mxu0 0
    %1736 = vmatpush1.bf16.msra.mxu0 0
    %1737 = vmatprep.subr.bf16.mxu0 0
    %1738 = vmatpush1.bf16.msra.mxu0 0
    %1739 = vmatprep.subr.bf16.mxu0 0
    %1740 = vmatpush1.bf16.msra.mxu0 0
    %1741 = vmatprep.subr.bf16.mxu0 0
    %1742 = vmatpush1.bf16.msra.mxu0 0
    %1743 = vmatprep.subr.bf16.mxu0 0
    %1744 = vmatpush1.bf16.msra.mxu0 0
    %1745 = vmatprep.subr.bf16.mxu0 0
    %1746 = vmatpush1.bf16.msra.mxu0 0
    %1747 = vmatprep.subr.bf16.mxu0 0
    %1748 = vmatpush1.bf16.msra.mxu0 0
    %1749 = vmatprep.subr.bf16.mxu0 0
    %1750 = vmatpush1.bf16.msra.mxu0 0
    %1751 = vmatprep.subr.bf16.mxu0 0
    %1752 = vmatpush1.bf16.msra.mxu0 0
    %1753 = vmatprep.subr.bf16.mxu0 0
    %1754 = vmatpush1.bf16.msra.mxu0 0
    %1755 = vmatprep.subr.bf16.mxu0 0
    %1756 = vmatpush1.bf16.msra.mxu0 0
    %1757 = vmatprep.subr.bf16.mxu0 0
    %1758 = vmatpush1.bf16.msra.mxu0 0
    %1759 = vmatprep.subr.bf16.mxu0 0
    %1760 = vmatpush1.bf16.msra.mxu0 0
    %1761 = vmatprep.subr.bf16.mxu0 0
    %1762 = vmatpush1.bf16.msra.mxu0 0
    %1763 = vmatprep.mubr.bf16.mxu0 0
    %1764 = vmatmul.mubr.bf16.gmra.mrb[0].mxu0 %v1726
    %v1765 = vpop.f32.mrb[0].mxu0
    %v1766 = vadd.f32 0.0, %v1765
    %v1767 = vpop.f32.mrb[0].mxu0
    %v1768 = vpop.f32.mrb[0].mxu0
    %v1769 = vpop.f32.mrb[0].mxu0
    %1770 = vdwg.mxu0
    %v1771 = vpack.c.bf16 %v1766, %v1766
    %v1772 = vld [vmem:[%s1058] sm:$0xf]
    %v1774 = vsel %vm382, %v1771, 0
    %v1777 = vsel %vm527, %v1772, 0
    %1779 = vmatprep.subr.bf16.mxu0 0
    %1780 = vmatpush1.bf16.msra.mxu0 %v1777
    %1781 = vmatprep.subr.bf16.mxu0 0
    %1782 = vmatpush1.bf16.msra.mxu0 0
    %1783 = vmatprep.subr.bf16.mxu0 0
    %1784 = vmatpush1.bf16.msra.mxu0 0
    %1785 = vmatprep.subr.bf16.mxu0 0
    %1786 = vmatpush1.bf16.msra.mxu0 0
    %1787 = vmatprep.subr.bf16.mxu0 0
    %1788 = vmatpush1.bf16.msra.mxu0 0
    %1789 = vmatprep.subr.bf16.mxu0 0
    %1790 = vmatpush1.bf16.msra.mxu0 0
    %1791 = vmatprep.subr.bf16.mxu0 0
    %1792 = vmatpush1.bf16.msra.mxu0 0
    %1793 = vmatprep.subr.bf16.mxu0 0
    %1794 = vmatpush1.bf16.msra.mxu0 0
    %1795 = vmatprep.subr.bf16.mxu0 0
    %1796 = vmatpush1.bf16.msra.mxu0 0
    %1797 = vmatprep.subr.bf16.mxu0 0
    %1798 = vmatpush1.bf16.msra.mxu0 0
    %1799 = vmatprep.subr.bf16.mxu0 0
    %1800 = vmatpush1.bf16.msra.mxu0 0
    %1801 = vmatprep.subr.bf16.mxu0 0
    %1802 = vmatpush1.bf16.msra.mxu0 0
    %1803 = vmatprep.subr.bf16.mxu0 0
    %1804 = vmatpush1.bf16.msra.mxu0 0
    %1805 = vmatprep.subr.bf16.mxu0 0
    %1806 = vmatpush1.bf16.msra.mxu0 0
    %1807 = vmatprep.subr.bf16.mxu0 0
    %1808 = vmatpush1.bf16.msra.mxu0 0
    %1809 = vmatprep.subr.bf16.mxu0 0
    %1810 = vmatpush1.bf16.msra.mxu0 0
    %1811 = vmatprep.mubr.bf16.mxu0 0
    %1812 = vmatmul.mubr.bf16.gmra.mrb[0].mxu0 %v1774
    %v1813 = vpop.f32.mrb[0].mxu0
    %v1814 = vadd.f32 0.0, %v1813
    %v1815 = vpop.f32.mrb[0].mxu0
    %v1816 = vpop.f32.mrb[0].mxu0
    %v1817 = vpop.f32.mrb[0].mxu0
    %1818 = vdwg.mxu0
    %v1819 = vadd.f32 %v1658, %v1814
    %s1820 = scalar_lea.vmem [#allocation11], 8
    %1821 = vst.msk [vmem:[%s1820] sm:$0xff] %vm124, %v1819
    %s1822 = scalar_lea.vmem [#allocation12], 8
    %1823 = vst.msk [vmem:[%s1822] sm:$0xff] %vm382, %v1227
    // Predicated region
    $region58: #{tpu_custom_call.1} parent=1 // pred_check
      _
    $region59: #{tpu_custom_call.1} parent=1 // pred_check_branch
      %1825 = sbr.rel (0) target = $region61
    $region60: #{tpu_custom_call.1} parent=1 // pred_region
      %s1827 = ssub.s32 256, 256
      %1828 = vsyncadd [#allocation4], %s1827
      %s1829 = sshll.u32 [#allocation11], 4
      %s1830 = int_to_ptr.vmem [resolvable:$true] %s1829
      %1835 = dma.vmem_to_hbm [thread:$0]  %s1830, 256, %s9, [#allocation4], 128, 128, 8
    $region61: #{tpu_custom_call.1} parent=1 // pred_fallthru
      _
    // Predicated region
    $region62: #{tpu_custom_call.1} parent=1 // pred_check
      _
    $region63: #{tpu_custom_call.1} parent=1 // pred_check_branch
      %1837 = sbr.rel (0) target = $region65
    $region64: #{tpu_custom_call.1} parent=1 // pred_region
      %s1839 = ssub.s32 256, 256
      %1840 = vsyncadd [#allocation13], %s1839
      %s1841 = sshll.u32 [#allocation12], 4
      %s1842 = int_to_ptr.vmem [resolvable:$true] %s1841
      %1847 = dma.vmem_to_hbm [thread:$0]  %s1842, 256, %s10, [#allocation13], 128, 128, 8
    $region65: #{tpu_custom_call.1} parent=1 // pred_fallthru
      _
    // Predicated region
    $region66: #{tpu_custom_call.1} parent=1 // pred_check
      _
    $region67: #{tpu_custom_call.1} parent=1 // pred_check_branch
      %1849 = sbr.rel (0) target = $region69
    $region68: #{tpu_custom_call.1} parent=1 // pred_region
      %1850 = dma.done [#allocation4], 256
    $region69: #{tpu_custom_call.1} parent=1 // pred_fallthru
      _
    // Predicated region
    $region70: #{tpu_custom_call.1} parent=1 // pred_check
      _
    $region71: #{tpu_custom_call.1} parent=1 // pred_check_branch
      %1852 = sbr.rel (0) target = $region73
    $region72: #{tpu_custom_call.1} parent=1 // pred_region
      %1853 = dma.done [#allocation13], 256
    $region73: #{tpu_custom_call.1} parent=1 // pred_fallthru
      _
    %1854 = vsyncpa [#allocation3], 1
    %1855 = vsyncpa [#allocation6], 1
    %1856 = vsyncpa [#allocation9], 1
    %1857 = vsyncpa [#allocation4], 1
    %1858 = vsyncpa [#allocation13], 1

</llo_original>
